<compile_context>
chip_gen: v7x
topology: tpu7x:2x2x1
jax: 0.10.0
libtpu: 0.0.40
codegen_flags: <defaults>
</compile_context>

<pallas_src>
import math

import jax
import jax.numpy as jnp
from jax.experimental import pallas as pl
from jax.experimental.pallas import tpu as pltpu


def _round_up(x, m):
    return ((x + m - 1) // m) * m


def _pad2(a, rows, cols):
    return jnp.pad(a, ((0, rows - a.shape[0]), (0, cols - a.shape[1])))


def _make_rnn_kernel(num_layers, hp, cell_type, mm_dtype):
    """Fused per-time-step kernel body (closure over static config)."""

    def kernel(*refs):
        nl = num_layers
        h0_ref = refs[0]                       # [L, Bp, Hp]
        emb_ref = refs[1]                      # [1, Bp, Ep]  (this time step)
        layer_refs = refs[2: 2 + 3 * nl]       # per layer: wx, wh, bias
        wout_ref = refs[2 + 3 * nl]            # [Hp, Vp]
        bout_ref = refs[3 + 3 * nl]            # [1, Vp]
        logits_ref = refs[4 + 3 * nl]          # [1, Bp, Vp]
        state_out_ref = refs[5 + 3 * nl]       # [L, Bp, Hp] (written at last step)
        state_vmem = refs[6 + 3 * nl]          # VMEM scratch [L, Bp, Hp] (carried)

        t = pl.program_id(0)

        @pl.when(t == 0)
        def _init():
            state_vmem[...] = h0_ref[...]

        x = emb_ref[0]                         # [Bp, Ep] layer-0 input
        for l in range(nl):
            wx_ref = layer_refs[3 * l + 0]     # [in_p, G*Hp]  (mm_dtype)
            wh_ref = layer_refs[3 * l + 1]     # [Hp,  G*Hp]   (mm_dtype)
            b_ref = layer_refs[3 * l + 2]      # [1,   G*Hp]   (f32)
            h = state_vmem[l]                  # [Bp, Hp] f32

            if cell_type == "GRU":
                # Fused gate linear: [x] @ [W_ux|W_rx|W_cx] + [b_u|b_r|b_c]
                gx = jnp.dot(x.astype(mm_dtype), wx_ref[...],
                             preferred_element_type=jnp.float32) + b_ref[...]
                # Fused u/r hidden contribution: h @ [W_uh|W_rh]
                gh = jnp.dot(h.astype(mm_dtype), wh_ref[:, :2 * hp],
                             preferred_element_type=jnp.float32)
                u = jax.nn.sigmoid(gx[:, :hp] + gh[:, :hp])
                r = jax.nn.sigmoid(gx[:, hp:2 * hp] + gh[:, hp:2 * hp])
                c = jnp.tanh(
                    gx[:, 2 * hp:]
                    + jnp.dot((r * h).astype(mm_dtype), wh_ref[:, 2 * hp:],
                              preferred_element_type=jnp.float32))
                h_new = u * h + (1.0 - u) * c
            else:  # vanilla RNN cell
                lin = (jnp.dot(x.astype(mm_dtype), wx_ref[...],
                               preferred_element_type=jnp.float32)
                       + jnp.dot(h.astype(mm_dtype), wh_ref[...],
                                 preferred_element_type=jnp.float32)
                       + b_ref[...])
                h_new = jnp.tanh(lin)

            state_vmem[l] = h_new
            x = h_new                          # input to next stacked layer

        # Output layer (nn.Linear) for this time step, lane-dense [Bp, Vp].
        logits = jnp.dot(x.astype(mm_dtype), wout_ref[...],
                         preferred_element_type=jnp.float32) + bout_ref[...]
        logits_ref[0] = logits.astype(logits_ref.dtype)

        @pl.when(t == pl.num_programs(0) - 1)
        def _final():
            state_out_ref[...] = state_vmem[...]

    return kernel


def rnn_forward(xTokens, initial_hidden_state, params, *, cell_type="RNN",
                matmul_dtype=jnp.float32):
    """Pallas forward of the stacked RNN/GRU (is_train=True path of RNN.forward).

    xTokens:               [B, T] int token ids
    initial_hidden_state:  [L, B, H] float32
    params: dict with
        "embedding": [vocab, E]
        "cells": list of per-layer dicts
            GRU: weight_u/weight_r/weight [in_l+H, H], bias_u/bias_r/bias [1, H]
            RNN: weight [in_l+H, H], bias [1, H]
        "out_w": [H, vocab], "out_b": [1, vocab]
    Returns: logits [B, T, vocab], final_state [L, B, H]
    """
    emb_matrix = params["embedding"]
    cells = params["cells"]
    w_out, b_out = params["out_w"], params["out_b"]

    B, T = xTokens.shape
    L, _, H = initial_hidden_state.shape
    E = emb_matrix.shape[1]
    V = w_out.shape[1]

    Bp = _round_up(B, 8)
    Ep = _round_up(E, 128)
    Hp = _round_up(H, 128)
    Vp = _round_up(V, 128)
    G = 3 if cell_type == "GRU" else 1

    # Embedding lookup in the wrapper (data-dependent gather), then lane-dense
    # [T, Bp, Ep] layout so each grid step streams exactly one time slice.
    emb = jnp.take(emb_matrix, xTokens, axis=0)            # [B, T, E]
    emb = jnp.transpose(emb, (1, 0, 2))                    # [T, B, E]
    emb = jnp.pad(emb, ((0, 0), (0, Bp - B), (0, Ep - E))).astype(jnp.float32)

    h0 = jnp.pad(initial_hidden_state,
                 ((0, 0), (0, Bp - B), (0, Hp - H))).astype(jnp.float32)

    # Pack + pad per-layer weights. torch.cat((x, h), 1) @ W == x @ W[:in] + h @ W[in:].
    # Gate blocks are padded individually to Hp so each lands at lane offset 0/Hp/2Hp.
    weight_args = []
    in_specs = [
        pl.BlockSpec((L, Bp, Hp), lambda t: (0, 0, 0)),    # h0 (read at t==0)
        pl.BlockSpec((1, Bp, Ep), lambda t: (t, 0, 0)),    # embedded tokens, step t
    ]
    for l, cp in enumerate(cells):
        in_l = E if l == 0 else H
        in_p = Ep if l == 0 else Hp
        if cell_type == "GRU":
            ws = (cp["weight_u"], cp["weight_r"], cp["weight"])
            bs = (cp["bias_u"], cp["bias_r"], cp["bias"])
        else:
            ws = (cp["weight"],)
            bs = (cp["bias"],)
        wx = jnp.concatenate([_pad2(w[:in_l], in_p, Hp) for w in ws], axis=1)
        wh = jnp.concatenate([_pad2(w[in_l:], Hp, Hp) for w in ws], axis=1)
        bb = jnp.concatenate([_pad2(b, 1, Hp) for b in bs], axis=1)
        weight_args += [wx.astype(matmul_dtype), wh.astype(matmul_dtype),
                        bb.astype(jnp.float32)]
        in_specs += [
            pl.BlockSpec((in_p, G * Hp), lambda t: (0, 0)),   # resident across T
            pl.BlockSpec((Hp, G * Hp), lambda t: (0, 0)),
            pl.BlockSpec((1, G * Hp), lambda t: (0, 0)),
        ]

    wout = _pad2(w_out, Hp, Vp).astype(matmul_dtype)
    bout = _pad2(b_out, 1, Vp).astype(jnp.float32)
    in_specs += [
        pl.BlockSpec((Hp, Vp), lambda t: (0, 0)),
        pl.BlockSpec((1, Vp), lambda t: (0, 0)),
    ]

    kernel = _make_rnn_kernel(L, Hp, cell_type, matmul_dtype)

    grid_spec = pltpu.PrefetchScalarGridSpec(
        num_scalar_prefetch=0,
        grid=(T,),
        in_specs=in_specs,
        out_specs=[
            pl.BlockSpec((1, Bp, Vp), lambda t: (t, 0, 0)),   # per-step logits
            pl.BlockSpec((L, Bp, Hp), lambda t: (0, 0, 0)),   # final hidden state
        ],
        scratch_shapes=[pltpu.VMEM((L, Bp, Hp), jnp.float32)],
    )

    logits_p, state_p = pl.pallas_call(
        kernel,
        grid_spec=grid_spec,
        out_shape=(jax.ShapeDtypeStruct((T, Bp, Vp), jnp.float32),
                   jax.ShapeDtypeStruct((L, Bp, Hp), jnp.float32)),
        compiler_params=pltpu.CompilerParams(
            # Time axis carries the recurrence through VMEM scratch -> sequential.
            dimension_semantics=("arbitrary",)),
    )(h0, emb, *weight_args, wout, bout)

    logits = jnp.transpose(logits_p[:, :B, :V], (1, 0, 2))    # [B, T, V]
    final_state = state_p[:, :B, :H]                          # [L, B, H]
    return logits, final_state


def init_params(key, vocab_size, embed_size, hidden_size, num_layers, cell_type):
    """Deterministic synthetic parameters matching the PyTorch module shapes."""
    keys = iter(jax.random.split(key, 4 + 8 * num_layers))

    def normal(shape, std):
        return std * jax.random.normal(next(keys), shape, jnp.float32)

    params = {
        "embedding": normal((vocab_size, embed_size), 0.1),
        "out_w": normal((hidden_size, vocab_size), 1.0 / math.sqrt(hidden_size)),
        "out_b": normal((1, vocab_size), 0.1),
        "cells": [],
    }
    for l in range(num_layers):
        in_l = embed_size if l == 0 else hidden_size
        n = hidden_size + in_l
        std = 1.0 / math.sqrt(n)
        if cell_type == "GRU":
            cell = {
                "weight_u": normal((n, hidden_size), std),
                "weight_r": normal((n, hidden_size), std),
                "weight": normal((n, hidden_size), std),
                # Module spec zero-inits biases; use small random values here so
                # the bias path is actually exercised by the correctness check.
                "bias_u": normal((1, hidden_size), 0.1),
                "bias_r": normal((1, hidden_size), 0.1),
                "bias": normal((1, hidden_size), 0.1),
            }
        else:
            cell = {
                "weight": normal((n, hidden_size), std),
                "bias": normal((1, hidden_size), 0.1),
            }
        params["cells"].append(cell)
    return params


def rnn_reference(xTokens, initial_hidden_state, params, cell_type):
    """Pure-JAX replica of the PyTorch RNN.forward (is_train=True path)."""
    emb = params["embedding"][xTokens]          # [B, T, E]
    B, T = xTokens.shape
    L = initial_hidden_state.shape[0]
    states = [initial_hidden_state[j] for j in range(L)]
    logits_steps = []
    for i in range(T):
        cell_input = emb[:, i, :]
        for j in range(L):
            cp = params["cells"][j]
            h_old = states[j]
            if cell_type == "GRU":
                conc = jnp.concatenate([cell_input, h_old], axis=1)
                u = jax.nn.sigmoid(conc @ cp["weight_u"] + cp["bias_u"])
                r = jax.nn.sigmoid(conc @ cp["weight_r"] + cp["bias_r"])
                conc_c = jnp.concatenate([cell_input, r * h_old], axis=1)
                c = jnp.tanh(conc_c @ cp["weight"] + cp["bias"])
                h_new = u * h_old + (1.0 - u) * c
            else:
                conc = jnp.concatenate([cell_input, h_old], axis=1)
                h_new = jnp.tanh(conc @ cp["weight"] + cp["bias"])
            states[j] = h_new
            cell_input = h_new
        logits_steps.append(cell_input @ params["out_w"] + params["out_b"])
    logits = jnp.stack(logits_steps, axis=1)     # [B, T, V]
    return logits, jnp.stack(states, axis=0)     # [L, B, H]


if __name__ == "__main__":
    B, T = 2, 6
    vocab, E, H, L = 100, 64, 32, 2

    key = jax.random.PRNGKey(0)
    k_tok, k_h, k_gru, k_rnn = jax.random.split(key, 4)

    xTokens = jax.random.randint(k_tok, (B, T), 0, vocab)
    h0 = 0.1 * jax.random.normal(k_h, (L, B, H), jnp.float32)

    for cell_type, k_p in (("GRU", k_gru), ("RNN", k_rnn)):
        params = init_params(k_p, vocab, E, H, L, cell_type)

        logits, final_state = rnn_forward(xTokens, h0, params,
                                          cell_type=cell_type,
                                          matmul_dtype=jnp.float32)
        logits = jax.block_until_ready(logits)
        final_state = jax.block_until_ready(final_state)

        ref_logits, ref_state = rnn_reference(xTokens, h0, params, cell_type)
        ref_logits = jax.block_until_ready(ref_logits)
        ref_state = jax.block_until_ready(ref_state)

        assert logits.shape == (B, T, vocab)
        assert final_state.shape == (L, B, H)
        assert jnp.allclose(logits, ref_logits, atol=1e-3, rtol=1e-3), cell_type
        assert jnp.allclose(final_state, ref_state, atol=1e-3, rtol=1e-3), cell_type

    print("KERNEL_OK")
</pallas_src>

<mosaic_0001>
module attributes {stable_mosaic.version = 11 : i64} {
  func.func @kernel(%arg0: i32, %arg1: memref<2x8x128xf32, #tpu.memory_space<vmem>>, %arg2: memref<1x8x128xf32, #tpu.memory_space<vmem>>, %arg3: memref<128x384xf32, #tpu.memory_space<vmem>>, %arg4: memref<128x384xf32, #tpu.memory_space<vmem>>, %arg5: memref<1x384xf32, #tpu.memory_space<vmem>>, %arg6: memref<128x384xf32, #tpu.memory_space<vmem>>, %arg7: memref<128x384xf32, #tpu.memory_space<vmem>>, %arg8: memref<1x384xf32, #tpu.memory_space<vmem>>, %arg9: memref<128x128xf32, #tpu.memory_space<vmem>>, %arg10: memref<1x128xf32, #tpu.memory_space<vmem>>, %arg11: memref<1x8x128xf32, #tpu.memory_space<vmem>>, %arg12: memref<2x8x128xf32, #tpu.memory_space<vmem>>, %arg13: memref<2x8x128xf32, #tpu.memory_space<vmem>>) attributes {dimension_semantics = [#tpu.dimension_semantics<arbitrary>], iteration_bounds = array<i64: 6>, scalar_prefetch = 0 : i64, scratch_operands = 1 : i64, tpu.core_type = #tpu.core_type<tc>, window_params = [{pipeline_mode = #tpu.pipeline_mode<synchronous>, transform_indices = @transform_0, window_bounds = array<i64: 2, 8, 128>}, {transform_indices = @transform_1, window_bounds = array<i64: 1, 8, 128>}, {pipeline_mode = #tpu.pipeline_mode<synchronous>, transform_indices = @transform_2, window_bounds = array<i64: 128, 384>}, {pipeline_mode = #tpu.pipeline_mode<synchronous>, transform_indices = @transform_3, window_bounds = array<i64: 128, 384>}, {pipeline_mode = #tpu.pipeline_mode<synchronous>, transform_indices = @transform_4, window_bounds = array<i64: 1, 384>}, {pipeline_mode = #tpu.pipeline_mode<synchronous>, transform_indices = @transform_5, window_bounds = array<i64: 128, 384>}, {pipeline_mode = #tpu.pipeline_mode<synchronous>, transform_indices = @transform_6, window_bounds = array<i64: 128, 384>}, {pipeline_mode = #tpu.pipeline_mode<synchronous>, transform_indices = @transform_7, window_bounds = array<i64: 1, 384>}, {pipeline_mode = #tpu.pipeline_mode<synchronous>, transform_indices = @transform_8, window_bounds = array<i64: 128, 128>}, {pipeline_mode = #tpu.pipeline_mode<synchronous>, transform_indices = @transform_9, window_bounds = array<i64: 1, 128>}, {transform_indices = @transform_10, window_bounds = array<i64: 1, 8, 128>}, {pipeline_mode = #tpu.pipeline_mode<synchronous>, transform_indices = @transform_11, window_bounds = array<i64: 2, 8, 128>}]} {
    %c0_i32 = arith.constant 0 : i32
    %0 = arith.cmpi eq, %arg0, %c0_i32 : i32
    %1 = arith.extui %0 : i1 to i32
    %c0_i32_0 = arith.constant 0 : i32
    %2 = arith.cmpi ne, %1, %c0_i32_0 : i32
    scf.if %2 {
      %c0_49 = arith.constant 0 : index
      %c0_50 = arith.constant 0 : index
      %c0_51 = arith.constant 0 : index
      %94 = vector.load %arg1[%c0_49, %c0_50, %c0_51] : memref<2x8x128xf32, #tpu.memory_space<vmem>>, vector<2x8x128xf32>
      %c0_52 = arith.constant 0 : index
      %c0_53 = arith.constant 0 : index
      %c0_54 = arith.constant 0 : index
      %95 = vector.load %arg13[%c0_52, %c0_53, %c0_54] : memref<2x8x128xf32, #tpu.memory_space<vmem>>, vector<2x8x128xf32>
      tpu.vector_store %arg13[%c0_52, %c0_53, %c0_54], %94 {strides = array<i32>} : memref<2x8x128xf32, #tpu.memory_space<vmem>>, vector<2x8x128xf32>,
    } else {
    }
    %c0 = arith.constant 0 : index
    %c0_1 = arith.constant 0 : index
    %c0_2 = arith.constant 0 : index
    %3 = vector.load %arg2[%c0, %c0_1, %c0_2] : memref<1x8x128xf32, #tpu.memory_space<vmem>>, vector<1x8x128xf32>
    %4 = vector.shape_cast %3 : vector<1x8x128xf32> to vector<8x128xf32>
    %c0_3 = arith.constant 0 : index
    %c0_4 = arith.constant 0 : index
    %c0_5 = arith.constant 0 : index
    %5 = vector.load %arg13[%c0_3, %c0_4, %c0_5] : memref<2x8x128xf32, #tpu.memory_space<vmem>>, vector<1x8x128xf32>
    %6 = vector.shape_cast %5 : vector<1x8x128xf32> to vector<8x128xf32>
    %c0_6 = arith.constant 0 : index
    %c0_7 = arith.constant 0 : index
    %7 = vector.load %arg3[%c0_6, %c0_7] : memref<128x384xf32, #tpu.memory_space<vmem>>, vector<128x384xf32>
    %cst = arith.constant dense<0.000000e+00> : vector<8x384xf32>
    %8 = tpu.matmul %4, %7, %cst {dimension_numbers = #tpu.dot_dimension_numbers<[1], [0], [0], [1], [0, 0, 1, 1], [], []>} : vector<8x128xf32>, vector<128x384xf32>, vector<8x384xf32> -> vector<8x384xf32>
    %c0_8 = arith.constant 0 : index
    %c0_9 = arith.constant 0 : index
    %9 = vector.load %arg5[%c0_8, %c0_9] : memref<1x384xf32, #tpu.memory_space<vmem>>, vector<1x384xf32>
    %10 = vector.broadcast %9 : vector<1x384xf32> to vector<8x384xf32>
    %11 = arith.addf %8, %10 : vector<8x384xf32>
    %c0_10 = arith.constant 0 : index
    %c0_11 = arith.constant 0 : index
    %12 = vector.load %arg4[%c0_10, %c0_11] : memref<128x384xf32, #tpu.memory_space<vmem>>, vector<128x256xf32>
    %cst_12 = arith.constant dense<0.000000e+00> : vector<8x256xf32>
    %13 = tpu.matmul %6, %12, %cst_12 {dimension_numbers = #tpu.dot_dimension_numbers<[1], [0], [0], [1], [0, 0, 1, 1], [], []>} : vector<8x128xf32>, vector<128x256xf32>, vector<8x256xf32> -> vector<8x256xf32>
    %14 = vector.extract_strided_slice %11 {offsets = [0, 0], sizes = [8, 128], strides = [1, 1]} : vector<8x384xf32> to vector<8x128xf32>
    %15 = vector.extract_strided_slice %13 {offsets = [0, 0], sizes = [8, 128], strides = [1, 1]} : vector<8x256xf32> to vector<8x128xf32>
    %16 = arith.addf %14, %15 : vector<8x128xf32>
    %17 = arith.negf %16 : vector<8x128xf32>
    %18 = math.exp %17 : vector<8x128xf32>
    %cst_13 = arith.constant 1.000000e+00 : f32
    %19 = vector.broadcast %cst_13 : f32 to vector<8x128xf32>
    %20 = arith.addf %19, %18 : vector<8x128xf32>
    %21 = arith.divf %19, %20 : vector<8x128xf32>
    %22 = vector.extract_strided_slice %11 {offsets = [0, 128], sizes = [8, 128], strides = [1, 1]} : vector<8x384xf32> to vector<8x128xf32>
    %23 = vector.extract_strided_slice %13 {offsets = [0, 128], sizes = [8, 128], strides = [1, 1]} : vector<8x256xf32> to vector<8x128xf32>
    %24 = arith.addf %22, %23 : vector<8x128xf32>
    %25 = arith.negf %24 : vector<8x128xf32>
    %26 = math.exp %25 : vector<8x128xf32>
    %cst_14 = arith.constant 1.000000e+00 : f32
    %27 = vector.broadcast %cst_14 : f32 to vector<8x128xf32>
    %28 = arith.addf %27, %26 : vector<8x128xf32>
    %29 = arith.divf %27, %28 : vector<8x128xf32>
    %30 = vector.extract_strided_slice %11 {offsets = [0, 256], sizes = [8, 128], strides = [1, 1]} : vector<8x384xf32> to vector<8x128xf32>
    %31 = arith.mulf %29, %6 : vector<8x128xf32>
    %c0_15 = arith.constant 0 : index
    %c256 = arith.constant 256 : index
    %32 = vector.load %arg4[%c0_15, %c256] : memref<128x384xf32, #tpu.memory_space<vmem>>, vector<128x128xf32>
    %cst_16 = arith.constant dense<0.000000e+00> : vector<8x128xf32>
    %33 = tpu.matmul %31, %32, %cst_16 {dimension_numbers = #tpu.dot_dimension_numbers<[1], [0], [0], [1], [0, 0, 1, 1], [], []>} : vector<8x128xf32>, vector<128x128xf32>, vector<8x128xf32> -> vector<8x128xf32>
    %34 = arith.addf %30, %33 : vector<8x128xf32>
    %35 = math.tanh %34 : vector<8x128xf32>
    %36 = arith.mulf %21, %6 : vector<8x128xf32>
    %cst_17 = arith.constant 1.000000e+00 : f32
    %37 = vector.broadcast %cst_17 : f32 to vector<8x128xf32>
    %38 = arith.subf %37, %21 : vector<8x128xf32>
    %39 = arith.mulf %38, %35 : vector<8x128xf32>
    %40 = arith.addf %36, %39 : vector<8x128xf32>
    %c0_18 = arith.constant 0 : index
    %c0_19 = arith.constant 0 : index
    %c0_20 = arith.constant 0 : index
    %41 = vector.load %arg13[%c0_18, %c0_19, %c0_20] : memref<2x8x128xf32, #tpu.memory_space<vmem>>, vector<1x8x128xf32>
    %42 = vector.shape_cast %41 : vector<1x8x128xf32> to vector<8x128xf32>
    %43 = vector.shape_cast %40 : vector<8x128xf32> to vector<1x8x128xf32>
    tpu.vector_store %arg13[%c0_18, %c0_19, %c0_20], %43 {strides = array<i32>} : memref<2x8x128xf32, #tpu.memory_space<vmem>>, vector<1x8x128xf32>,
    %c1 = arith.constant 1 : index
    %c0_21 = arith.constant 0 : index
    %c0_22 = arith.constant 0 : index
    %44 = vector.load %arg13[%c1, %c0_21, %c0_22] : memref<2x8x128xf32, #tpu.memory_space<vmem>>, vector<1x8x128xf32>
    %45 = vector.shape_cast %44 : vector<1x8x128xf32> to vector<8x128xf32>
    %c0_23 = arith.constant 0 : index
    %c0_24 = arith.constant 0 : index
    %46 = vector.load %arg6[%c0_23, %c0_24] : memref<128x384xf32, #tpu.memory_space<vmem>>, vector<128x384xf32>
    %cst_25 = arith.constant dense<0.000000e+00> : vector<8x384xf32>
    %47 = tpu.matmul %40, %46, %cst_25 {dimension_numbers = #tpu.dot_dimension_numbers<[1], [0], [0], [1], [0, 0, 1, 1], [], []>} : vector<8x128xf32>, vector<128x384xf32>, vector<8x384xf32> -> vector<8x384xf32>
    %c0_26 = arith.constant 0 : index
    %c0_27 = arith.constant 0 : index
    %48 = vector.load %arg8[%c0_26, %c0_27] : memref<1x384xf32, #tpu.memory_space<vmem>>, vector<1x384xf32>
    %49 = vector.broadcast %48 : vector<1x384xf32> to vector<8x384xf32>
    %50 = arith.addf %47, %49 : vector<8x384xf32>
    %c0_28 = arith.constant 0 : index
    %c0_29 = arith.constant 0 : index
    %51 = vector.load %arg7[%c0_28, %c0_29] : memref<128x384xf32, #tpu.memory_space<vmem>>, vector<128x256xf32>
    %cst_30 = arith.constant dense<0.000000e+00> : vector<8x256xf32>
    %52 = tpu.matmul %45, %51, %cst_30 {dimension_numbers = #tpu.dot_dimension_numbers<[1], [0], [0], [1], [0, 0, 1, 1], [], []>} : vector<8x128xf32>, vector<128x256xf32>, vector<8x256xf32> -> vector<8x256xf32>
    %53 = vector.extract_strided_slice %50 {offsets = [0, 0], sizes = [8, 128], strides = [1, 1]} : vector<8x384xf32> to vector<8x128xf32>
    %54 = vector.extract_strided_slice %52 {offsets = [0, 0], sizes = [8, 128], strides = [1, 1]} : vector<8x256xf32> to vector<8x128xf32>
    %55 = arith.addf %53, %54 : vector<8x128xf32>
    %56 = arith.negf %55 : vector<8x128xf32>
    %57 = math.exp %56 : vector<8x128xf32>
    %cst_31 = arith.constant 1.000000e+00 : f32
    %58 = vector.broadcast %cst_31 : f32 to vector<8x128xf32>
    %59 = arith.addf %58, %57 : vector<8x128xf32>
    %60 = arith.divf %58, %59 : vector<8x128xf32>
    %61 = vector.extract_strided_slice %50 {offsets = [0, 128], sizes = [8, 128], strides = [1, 1]} : vector<8x384xf32> to vector<8x128xf32>
    %62 = vector.extract_strided_slice %52 {offsets = [0, 128], sizes = [8, 128], strides = [1, 1]} : vector<8x256xf32> to vector<8x128xf32>
    %63 = arith.addf %61, %62 : vector<8x128xf32>
    %64 = arith.negf %63 : vector<8x128xf32>
    %65 = math.exp %64 : vector<8x128xf32>
    %cst_32 = arith.constant 1.000000e+00 : f32
    %66 = vector.broadcast %cst_32 : f32 to vector<8x128xf32>
    %67 = arith.addf %66, %65 : vector<8x128xf32>
    %68 = arith.divf %66, %67 : vector<8x128xf32>
    %69 = vector.extract_strided_slice %50 {offsets = [0, 256], sizes = [8, 128], strides = [1, 1]} : vector<8x384xf32> to vector<8x128xf32>
    %70 = arith.mulf %68, %45 : vector<8x128xf32>
    %c0_33 = arith.constant 0 : index
    %c256_34 = arith.constant 256 : index
    %71 = vector.load %arg7[%c0_33, %c256_34] : memref<128x384xf32, #tpu.memory_space<vmem>>, vector<128x128xf32>
    %cst_35 = arith.constant dense<0.000000e+00> : vector<8x128xf32>
    %72 = tpu.matmul %70, %71, %cst_35 {dimension_numbers = #tpu.dot_dimension_numbers<[1], [0], [0], [1], [0, 0, 1, 1], [], []>} : vector<8x128xf32>, vector<128x128xf32>, vector<8x128xf32> -> vector<8x128xf32>
    %73 = arith.addf %69, %72 : vector<8x128xf32>
    %74 = math.tanh %73 : vector<8x128xf32>
    %75 = arith.mulf %60, %45 : vector<8x128xf32>
    %cst_36 = arith.constant 1.000000e+00 : f32
    %76 = vector.broadcast %cst_36 : f32 to vector<8x128xf32>
    %77 = arith.subf %76, %60 : vector<8x128xf32>
    %78 = arith.mulf %77, %74 : vector<8x128xf32>
    %79 = arith.addf %75, %78 : vector<8x128xf32>
    %c1_37 = arith.constant 1 : index
    %c0_38 = arith.constant 0 : index
    %c0_39 = arith.constant 0 : index
    %80 = vector.load %arg13[%c1_37, %c0_38, %c0_39] : memref<2x8x128xf32, #tpu.memory_space<vmem>>, vector<1x8x128xf32>
    %81 = vector.shape_cast %80 : vector<1x8x128xf32> to vector<8x128xf32>
    %82 = vector.shape_cast %79 : vector<8x128xf32> to vector<1x8x128xf32>
    tpu.vector_store %arg13[%c1_37, %c0_38, %c0_39], %82 {strides = array<i32>} : memref<2x8x128xf32, #tpu.memory_space<vmem>>, vector<1x8x128xf32>,
    %c0_40 = arith.constant 0 : index
    %c0_41 = arith.constant 0 : index
    %83 = vector.load %arg9[%c0_40, %c0_41] : memref<128x128xf32, #tpu.memory_space<vmem>>, vector<128x128xf32>
    %cst_42 = arith.constant dense<0.000000e+00> : vector<8x128xf32>
    %84 = tpu.matmul %79, %83, %cst_42 {dimension_numbers = #tpu.dot_dimension_numbers<[1], [0], [0], [1], [0, 0, 1, 1], [], []>} : vector<8x128xf32>, vector<128x128xf32>, vector<8x128xf32> -> vector<8x128xf32>
    %c0_43 = arith.constant 0 : index
    %c0_44 = arith.constant 0 : index
    %85 = vector.load %arg10[%c0_43, %c0_44] : memref<1x128xf32, #tpu.memory_space<vmem>>, vector<1x128xf32>
    %86 = vector.broadcast %85 : vector<1x128xf32> to vector<8x128xf32>
    %87 = arith.addf %84, %86 : vector<8x128xf32>
    %c0_45 = arith.constant 0 : index
    %c0_46 = arith.constant 0 : index
    %c0_47 = arith.constant 0 : index
    %88 = vector.load %arg11[%c0_45, %c0_46, %c0_47] : memref<1x8x128xf32, #tpu.memory_space<vmem>>, vector<1x8x128xf32>
    %89 = vector.shape_cast %88 : vector<1x8x128xf32> to vector<8x128xf32>
    %90 = vector.shape_cast %87 : vector<8x128xf32> to vector<1x8x128xf32>
    tpu.vector_store %arg11[%c0_45, %c0_46, %c0_47], %90 {strides = array<i32>} : memref<1x8x128xf32, #tpu.memory_space<vmem>>, vector<1x8x128xf32>,
    %c5_i32 = arith.constant 5 : i32
    %91 = arith.cmpi eq, %arg0, %c5_i32 : i32
    %92 = arith.extui %91 : i1 to i32
    %c0_i32_48 = arith.constant 0 : i32
    %93 = arith.cmpi ne, %92, %c0_i32_48 : i32
    scf.if %93 {
      %c0_49 = arith.constant 0 : index
      %c0_50 = arith.constant 0 : index
      %c0_51 = arith.constant 0 : index
      %94 = vector.load %arg13[%c0_49, %c0_50, %c0_51] : memref<2x8x128xf32, #tpu.memory_space<vmem>>, vector<2x8x128xf32>
      %c0_52 = arith.constant 0 : index
      %c0_53 = arith.constant 0 : index
      %c0_54 = arith.constant 0 : index
      %95 = vector.load %arg12[%c0_52, %c0_53, %c0_54] : memref<2x8x128xf32, #tpu.memory_space<vmem>>, vector<2x8x128xf32>
      tpu.vector_store %arg12[%c0_52, %c0_53, %c0_54], %94 {strides = array<i32>} : memref<2x8x128xf32, #tpu.memory_space<vmem>>, vector<2x8x128xf32>,
    } else {
    }
    return
  }
  func.func @transform_0(%arg0: i32) -> (i32, i32, i32) {
    %c0_i32 = arith.constant 0 : i32
    %c0_i32_0 = arith.constant 0 : i32
    %c0_i32_1 = arith.constant 0 : i32
    %c0_i32_2 = arith.constant 0 : i32
    return %c0_i32, %c0_i32_0, %c0_i32_1 : i32, i32, i32
  }
  func.func @transform_1(%arg0: i32) -> (i32, i32, i32) {
    %c0_i32 = arith.constant 0 : i32
    %c0_i32_0 = arith.constant 0 : i32
    %c0_i32_1 = arith.constant 0 : i32
    return %arg0, %c0_i32, %c0_i32_0 : i32, i32, i32
  }
  func.func @transform_2(%arg0: i32) -> (i32, i32) {
    %c0_i32 = arith.constant 0 : i32
    %c0_i32_0 = arith.constant 0 : i32
    %c0_i32_1 = arith.constant 0 : i32
    return %c0_i32, %c0_i32_0 : i32, i32
  }
  func.func @transform_3(%arg0: i32) -> (i32, i32) {
    %c0_i32 = arith.constant 0 : i32
    %c0_i32_0 = arith.constant 0 : i32
    %c0_i32_1 = arith.constant 0 : i32
    return %c0_i32, %c0_i32_0 : i32, i32
  }
  func.func @transform_4(%arg0: i32) -> (i32, i32) {
    %c0_i32 = arith.constant 0 : i32
    %c0_i32_0 = arith.constant 0 : i32
    %c0_i32_1 = arith.constant 0 : i32
    return %c0_i32, %c0_i32_0 : i32, i32
  }
  func.func @transform_5(%arg0: i32) -> (i32, i32) {
    %c0_i32 = arith.constant 0 : i32
    %c0_i32_0 = arith.constant 0 : i32
    %c0_i32_1 = arith.constant 0 : i32
    return %c0_i32, %c0_i32_0 : i32, i32
  }
  func.func @transform_6(%arg0: i32) -> (i32, i32) {
    %c0_i32 = arith.constant 0 : i32
    %c0_i32_0 = arith.constant 0 : i32
    %c0_i32_1 = arith.constant 0 : i32
    return %c0_i32, %c0_i32_0 : i32, i32
  }
  func.func @transform_7(%arg0: i32) -> (i32, i32) {
    %c0_i32 = arith.constant 0 : i32
    %c0_i32_0 = arith.constant 0 : i32
    %c0_i32_1 = arith.constant 0 : i32
    return %c0_i32, %c0_i32_0 : i32, i32
  }
  func.func @transform_8(%arg0: i32) -> (i32, i32) {
    %c0_i32 = arith.constant 0 : i32
    %c0_i32_0 = arith.constant 0 : i32
    %c0_i32_1 = arith.constant 0 : i32
    return %c0_i32, %c0_i32_0 : i32, i32
  }
  func.func @transform_9(%arg0: i32) -> (i32, i32) {
    %c0_i32 = arith.constant 0 : i32
    %c0_i32_0 = arith.constant 0 : i32
    %c0_i32_1 = arith.constant 0 : i32
    return %c0_i32, %c0_i32_0 : i32, i32
  }
  func.func @transform_10(%arg0: i32) -> (i32, i32, i32) {
    %c0_i32 = arith.constant 0 : i32
    %c0_i32_0 = arith.constant 0 : i32
    %c0_i32_1 = arith.constant 0 : i32
    return %arg0, %c0_i32, %c0_i32_0 : i32, i32, i32
  }
  func.func @transform_11(%arg0: i32) -> (i32, i32, i32) {
    %c0_i32 = arith.constant 0 : i32
    %c0_i32_0 = arith.constant 0 : i32
    %c0_i32_1 = arith.constant 0 : i32
    %c0_i32_2 = arith.constant 0 : i32
    return %c0_i32, %c0_i32_0, %c0_i32_1 : i32, i32, i32
  }
}

</mosaic_0001>

<llo_original>
// kernel: tpu_custom_call.1
$region0: #{tpu_custom_call.1}
  #allocation0 [shape = 'u32[]', space=smem, size = 0x4, offset = 0x4, fixed_abs, tag = 'smem constant byte address 0x4 - core index']
  #allocation1 [shape = 'u32[144,128]{1,0:T(1,128)}', space=vmem, size = 0x12000, scoped, tag = 'internal scratch']
  #allocation2 [shape = 'f32[2,8,128]{2,1,0:T(8,128)}', space=vmem, size = 0x2000, scoped, tag = 'scratch operand']
  %s0 = inlined_call_operand.hbm [shape: f32[2,8,128], index: 0, kind: input, shape index: {}]
  %s1 = inlined_call_operand.hbm [shape: f32[6,8,128], index: 1, kind: input, shape index: {}]
  %s2 = inlined_call_operand.hbm [shape: f32[128,384], index: 2, kind: input, shape index: {}]
  %s3 = inlined_call_operand.hbm [shape: f32[128,384], index: 3, kind: input, shape index: {}]
  %s4 = inlined_call_operand.vmem [shape: f32[1,384], index: 4, kind: input, shape index: {}]
  %s5 = inlined_call_operand.hbm [shape: f32[128,384], index: 5, kind: input, shape index: {}]
  %s6 = inlined_call_operand.hbm [shape: f32[128,384], index: 6, kind: input, shape index: {}]
  %s7 = inlined_call_operand.vmem [shape: f32[1,384], index: 7, kind: input, shape index: {}]
  %s8 = inlined_call_operand.hbm [shape: f32[128,128], index: 8, kind: input, shape index: {}]
  %s9 = inlined_call_operand.vmem [shape: f32[1,128], index: 9, kind: input, shape index: {}]
  %s10 = inlined_call_operand.hbm [shape: f32[6,8,128], index: 10, kind: output, shape index: {0}]
  %s11 = inlined_call_operand.hbm [shape: f32[2,8,128], index: 11, kind: output, shape index: {1}]
  %12 = xla_tuple %s10, %s11
  %s13 = sld [smem:[#allocation0]]
  $region117: #{tpu_custom_call.1} parent=0
    _
  %s15 = ssub.s32 1, %s13
  %s16 = scalar_select 0, %s15, %s13
  $region1: #{tpu_custom_call.1} parent=0
    #allocation3 [shape = 'u8[8192]{0}', space=vmem, size = 0x2000, scoped, tag = 'input window, operand 0, single buffered']
    #allocation4 [shape = 's32[2]{0}', space=sflag, size = 0x8, scoped, tag = 'scoped memory for tpu_custom_call.1']
    #allocation5 [shape = 's32[2]{0}', space=sflag, size = 0x8, scoped, tag = 'scoped memory for tpu_custom_call.1']
    #allocation6 [shape = 'u8[8192]{0}', space=vmem, size = 0x2000, scoped, tag = 'input window, operand 1']
    #allocation7 [shape = 's32[2]{0}', space=sflag, size = 0x8, scoped, tag = 'scoped memory for tpu_custom_call.1']
    #allocation8 [shape = 'u8[196608]{0}', space=vmem, size = 0x30000, scoped, tag = 'input window, operand 2, single buffered']
    #allocation9 [shape = 'u8[196608]{0}', space=vmem, size = 0x30000, scoped, tag = 'input window, operand 3, single buffered']
    #allocation10 [shape = 's32[1]{0}', space=sflag, size = 0x4, scoped, tag = 'scoped memory for tpu_custom_call.1']
    #allocation11 [shape = 'u8[196608]{0}', space=vmem, size = 0x30000, scoped, tag = 'input window, operand 5, single buffered']
    #allocation12 [shape = 'u8[196608]{0}', space=vmem, size = 0x30000, scoped, tag = 'input window, operand 6, single buffered']
    #allocation13 [shape = 's32[1]{0}', space=sflag, size = 0x4, scoped, tag = 'scoped memory for tpu_custom_call.1']
    #allocation14 [shape = 'u8[65536]{0}', space=vmem, size = 0x10000, scoped, tag = 'input window, operand 8, single buffered']
    #allocation15 [shape = 'u8[8192]{0}', space=vmem, size = 0x2000, scoped, tag = 'output window, operand 0']
    #allocation16 [shape = 'u8[8192]{0}', space=vmem, size = 0x2000, scoped, tag = 'output window, operand 1, single buffered']
    #allocation17 [shape = 's32[1]{0}', space=sflag, size = 0x4, scoped, tag = 'scoped memory for tpu_custom_call.1']
    %17 = vsyncpa [#allocation4], 0
    %18 = vsyncpa [#allocation7], 0
    %s19 = scalar_lea.sflag [#allocation7], 1
    %20 = vsyncpa %s19, 0
    %21 = vsyncpa [#allocation10], 0
    %22 = vsyncpa [#allocation13], 0
    %23 = vsyncpa [#allocation5], 0
    %s24 = scalar_lea.sflag [#allocation5], 1
    %25 = vsyncpa %s24, 0
    %26 = vsyncpa [#allocation17], 0
    loop: start=0, step=1, limit=8
    $region2: #{tpu_custom_call.1} parent=1 // loop_pre_header
      _
    $region3: #{tpu_custom_call.1} parent=1 // loop_header
      %s28 = sphi 0, %s32
      %p29 = scmp.ge.s32.totalorder %s28, 8
      %s36 = sphi 0, %s36
      %s38 = sphi 0, %s36
      %s39 = sphi 0, %s38
      %s53 = sphi 0, %s39
      %s59 = sphi 0, %s61
      %s62 = sphi 0, %s59
      %s63 = sphi 0, %s62
      %s79 = sphi 0, %s63
      %s83 = sphi 0, %s83
      %s85 = sphi 0, %s83
      %s86 = sphi 0, %s85
      %s100 = sphi 0, %s86
      %s104 = sphi 0, %s104
      %s106 = sphi 0, %s104
      %s107 = sphi 0, %s106
      %s121 = sphi 0, %s107
      %s125 = sphi 0, %s125
      %s127 = sphi 0, %s125
      %s128 = sphi 0, %s127
      %s142 = sphi 0, %s128
      %s146 = sphi 0, %s146
      %s148 = sphi 0, %s146
      %s149 = sphi 0, %s148
      %s163 = sphi 0, %s149
      %s167 = sphi 0, %s167
      %s169 = sphi 0, %s167
      %s170 = sphi 0, %s169
      %s184 = sphi 0, %s170
      %s188 = sphi 0, %s188
      %s190 = sphi 0, %s188
      %s191 = sphi 0, %s190
      %s205 = sphi 0, %s191
      %s209 = sphi 0, %s209
      %s211 = sphi 0, %s209
      %s212 = sphi 0, %s211
      %s226 = sphi 0, %s212
      %s230 = sphi 0, %s230
      %s232 = sphi 0, %s230
      %s233 = sphi 0, %s232
      %s247 = sphi 0, %s233
      %s253 = sphi 0, %s255
      %s256 = sphi 0, %s253
      %s257 = sphi 0, %s256
      %s273 = sphi 0, %s257
      %s277 = sphi 0, %s277
      %s279 = sphi 0, %s277
      %s280 = sphi 0, %s279
      %s294 = sphi 0, %s280
    $region4: #{tpu_custom_call.1} parent=1 // loop_header_branch
      %31 = sbr.rel (%p29) target = $region8
    $region5: #{tpu_custom_call.1} parent=1 // loop_body
      %s33 = ssub.s32 %s28, 1
      %s34 = ssub.s32 %s28, 2
      %s35 = sadd.s32 %s28, 1
      %s37 = sadd.s32 %s36, 1
      %p40 = scmp.eq.s32.totalorder %s28, 5
      %p41 = scmp.ne.s32.totalorder %s36, %s38
      %p42 = scmp.eq.s32.totalorder %s28, 0
      %p43 = por %p41, %p42
      %p44 = scmp.ne.s32.totalorder %s36, %s38
      %p45 = scmp.eq.s32.totalorder %s33, 5
      %p46 = por %p44, %p45
      %p47 = scmp.ne.s32.totalorder %s38, %s39
      %p48 = scmp.eq.s32.totalorder %s33, 0
      %p49 = por %p47, %p48
      %p50 = scmp.ne.s32.totalorder %s38, %s39
      %p51 = scmp.eq.s32.totalorder %s34, 5
      %p52 = por %p50, %p51
      %p54 = scmp.ne.s32.totalorder %s39, %s53
      %p55 = scmp.eq.s32.totalorder %s34, 0
      %p56 = por %p54, %p55
      %s57 = ssub.s32 %s28, %s35
      %p58 = scmp.eq.s32.totalorder %s57, 0
      %s60 = sadd.s32 %s59, 1
      %s61 = scalar_select %p58, %s59, %s60
      %p64 = pneg %p58
      %p65 = scmp.eq.s32.totalorder %s28, 5
      %p66 = por %p64, %p65
      %p67 = scmp.ne.s32.totalorder %s59, %s62
      %p68 = scmp.eq.s32.totalorder %s28, 0
      %p69 = por %p67, %p68
      %p70 = scmp.ne.s32.totalorder %s59, %s62
      %p71 = scmp.eq.s32.totalorder %s33, 5
      %p72 = por %p70, %p71
      %p73 = scmp.ne.s32.totalorder %s62, %s63
      %p74 = scmp.eq.s32.totalorder %s33, 0
      %p75 = por %p73, %p74
      %p76 = scmp.ne.s32.totalorder %s62, %s63
      %p77 = scmp.eq.s32.totalorder %s34, 5
      %p78 = por %p76, %p77
      %p80 = scmp.ne.s32.totalorder %s63, %s79
      %p81 = scmp.eq.s32.totalorder %s34, 0
      %p82 = por %p80, %p81
      %s84 = sadd.s32 %s83, 1
      %p87 = scmp.eq.s32.totalorder %s28, 5
      %p88 = scmp.ne.s32.totalorder %s83, %s85
      %p89 = scmp.eq.s32.totalorder %s28, 0
      %p90 = por %p88, %p89
      %p91 = scmp.ne.s32.totalorder %s83, %s85
      %p92 = scmp.eq.s32.totalorder %s33, 5
      %p93 = por %p91, %p92
      %p94 = scmp.ne.s32.totalorder %s85, %s86
      %p95 = scmp.eq.s32.totalorder %s33, 0
      %p96 = por %p94, %p95
      %p97 = scmp.ne.s32.totalorder %s85, %s86
      %p98 = scmp.eq.s32.totalorder %s34, 5
      %p99 = por %p97, %p98
      %p101 = scmp.ne.s32.totalorder %s86, %s100
      %p102 = scmp.eq.s32.totalorder %s34, 0
      %p103 = por %p101, %p102
      %s105 = sadd.s32 %s104, 1
      %p108 = scmp.eq.s32.totalorder %s28, 5
      %p109 = scmp.ne.s32.totalorder %s104, %s106
      %p110 = scmp.eq.s32.totalorder %s28, 0
      %p111 = por %p109, %p110
      %p112 = scmp.ne.s32.totalorder %s104, %s106
      %p113 = scmp.eq.s32.totalorder %s33, 5
      %p114 = por %p112, %p113
      %p115 = scmp.ne.s32.totalorder %s106, %s107
      %p116 = scmp.eq.s32.totalorder %s33, 0
      %p117 = por %p115, %p116
      %p118 = scmp.ne.s32.totalorder %s106, %s107
      %p119 = scmp.eq.s32.totalorder %s34, 5
      %p120 = por %p118, %p119
      %p122 = scmp.ne.s32.totalorder %s107, %s121
      %p123 = scmp.eq.s32.totalorder %s34, 0
      %p124 = por %p122, %p123
      %s126 = sadd.s32 %s125, 1
      %p129 = scmp.eq.s32.totalorder %s28, 5
      %p130 = scmp.ne.s32.totalorder %s125, %s127
      %p131 = scmp.eq.s32.totalorder %s28, 0
      %p132 = por %p130, %p131
      %p133 = scmp.ne.s32.totalorder %s125, %s127
      %p134 = scmp.eq.s32.totalorder %s33, 5
      %p135 = por %p133, %p134
      %p136 = scmp.ne.s32.totalorder %s127, %s128
      %p137 = scmp.eq.s32.totalorder %s33, 0
      %p138 = por %p136, %p137
      %p139 = scmp.ne.s32.totalorder %s127, %s128
      %p140 = scmp.eq.s32.totalorder %s34, 5
      %p141 = por %p139, %p140
      %p143 = scmp.ne.s32.totalorder %s128, %s142
      %p144 = scmp.eq.s32.totalorder %s34, 0
      %p145 = por %p143, %p144
      %s147 = sadd.s32 %s146, 1
      %p150 = scmp.eq.s32.totalorder %s28, 5
      %p151 = scmp.ne.s32.totalorder %s146, %s148
      %p152 = scmp.eq.s32.totalorder %s28, 0
      %p153 = por %p151, %p152
      %p154 = scmp.ne.s32.totalorder %s146, %s148
      %p155 = scmp.eq.s32.totalorder %s33, 5
      %p156 = por %p154, %p155
      %p157 = scmp.ne.s32.totalorder %s148, %s149
      %p158 = scmp.eq.s32.totalorder %s33, 0
      %p159 = por %p157, %p158
      %p160 = scmp.ne.s32.totalorder %s148, %s149
      %p161 = scmp.eq.s32.totalorder %s34, 5
      %p162 = por %p160, %p161
      %p164 = scmp.ne.s32.totalorder %s149, %s163
      %p165 = scmp.eq.s32.totalorder %s34, 0
      %p166 = por %p164, %p165
      %s168 = sadd.s32 %s167, 1
      %p171 = scmp.eq.s32.totalorder %s28, 5
      %p172 = scmp.ne.s32.totalorder %s167, %s169
      %p173 = scmp.eq.s32.totalorder %s28, 0
      %p174 = por %p172, %p173
      %p175 = scmp.ne.s32.totalorder %s167, %s169
      %p176 = scmp.eq.s32.totalorder %s33, 5
      %p177 = por %p175, %p176
      %p178 = scmp.ne.s32.totalorder %s169, %s170
      %p179 = scmp.eq.s32.totalorder %s33, 0
      %p180 = por %p178, %p179
      %p181 = scmp.ne.s32.totalorder %s169, %s170
      %p182 = scmp.eq.s32.totalorder %s34, 5
      %p183 = por %p181, %p182
      %p185 = scmp.ne.s32.totalorder %s170, %s184
      %p186 = scmp.eq.s32.totalorder %s34, 0
      %p187 = por %p185, %p186
      %s189 = sadd.s32 %s188, 1
      %p192 = scmp.eq.s32.totalorder %s28, 5
      %p193 = scmp.ne.s32.totalorder %s188, %s190
      %p194 = scmp.eq.s32.totalorder %s28, 0
      %p195 = por %p193, %p194
      %p196 = scmp.ne.s32.totalorder %s188, %s190
      %p197 = scmp.eq.s32.totalorder %s33, 5
      %p198 = por %p196, %p197
      %p199 = scmp.ne.s32.totalorder %s190, %s191
      %p200 = scmp.eq.s32.totalorder %s33, 0
      %p201 = por %p199, %p200
      %p202 = scmp.ne.s32.totalorder %s190, %s191
      %p203 = scmp.eq.s32.totalorder %s34, 5
      %p204 = por %p202, %p203
      %p206 = scmp.ne.s32.totalorder %s191, %s205
      %p207 = scmp.eq.s32.totalorder %s34, 0
      %p208 = por %p206, %p207
      %s210 = sadd.s32 %s209, 1
      %p213 = scmp.eq.s32.totalorder %s28, 5
      %p214 = scmp.ne.s32.totalorder %s209, %s211
      %p215 = scmp.eq.s32.totalorder %s28, 0
      %p216 = por %p214, %p215
      %p217 = scmp.ne.s32.totalorder %s209, %s211
      %p218 = scmp.eq.s32.totalorder %s33, 5
      %p219 = por %p217, %p218
      %p220 = scmp.ne.s32.totalorder %s211, %s212
      %p221 = scmp.eq.s32.totalorder %s33, 0
      %p222 = por %p220, %p221
      %p223 = scmp.ne.s32.totalorder %s211, %s212
      %p224 = scmp.eq.s32.totalorder %s34, 5
      %p225 = por %p223, %p224
      %p227 = scmp.ne.s32.totalorder %s212, %s226
      %p228 = scmp.eq.s32.totalorder %s34, 0
      %p229 = por %p227, %p228
      %s231 = sadd.s32 %s230, 1
      %p234 = scmp.eq.s32.totalorder %s28, 5
      %p235 = scmp.ne.s32.totalorder %s230, %s232
      %p236 = scmp.eq.s32.totalorder %s28, 0
      %p237 = por %p235, %p236
      %p238 = scmp.ne.s32.totalorder %s230, %s232
      %p239 = scmp.eq.s32.totalorder %s33, 5
      %p240 = por %p238, %p239
      %p241 = scmp.ne.s32.totalorder %s232, %s233
      %p242 = scmp.eq.s32.totalorder %s33, 0
      %p243 = por %p241, %p242
      %p244 = scmp.ne.s32.totalorder %s232, %s233
      %p245 = scmp.eq.s32.totalorder %s34, 5
      %p246 = por %p244, %p245
      %p248 = scmp.ne.s32.totalorder %s233, %s247
      %p249 = scmp.eq.s32.totalorder %s34, 0
      %p250 = por %p248, %p249
      %s251 = ssub.s32 %s28, %s35
      %p252 = scmp.eq.s32.totalorder %s251, 0
      %s254 = sadd.s32 %s253, 1
      %s255 = scalar_select %p252, %s253, %s254
      %p258 = pneg %p252
      %p259 = scmp.eq.s32.totalorder %s28, 5
      %p260 = por %p258, %p259
      %p261 = scmp.ne.s32.totalorder %s253, %s256
      %p262 = scmp.eq.s32.totalorder %s28, 0
      %p263 = por %p261, %p262
      %p264 = scmp.ne.s32.totalorder %s253, %s256
      %p265 = scmp.eq.s32.totalorder %s33, 5
      %p266 = por %p264, %p265
      %p267 = scmp.ne.s32.totalorder %s256, %s257
      %p268 = scmp.eq.s32.totalorder %s33, 0
      %p269 = por %p267, %p268
      %p270 = scmp.ne.s32.totalorder %s256, %s257
      %p271 = scmp.eq.s32.totalorder %s34, 5
      %p272 = por %p270, %p271
      %p274 = scmp.ne.s32.totalorder %s257, %s273
      %p275 = scmp.eq.s32.totalorder %s34, 0
      %p276 = por %p274, %p275
      %s278 = sadd.s32 %s277, 1
      %p281 = scmp.eq.s32.totalorder %s28, 5
      %p282 = scmp.ne.s32.totalorder %s277, %s279
      %p283 = scmp.eq.s32.totalorder %s28, 0
      %p284 = por %p282, %p283
      %p285 = scmp.ne.s32.totalorder %s277, %s279
      %p286 = scmp.eq.s32.totalorder %s33, 5
      %p287 = por %p285, %p286
      %p288 = scmp.ne.s32.totalorder %s279, %s280
      %p289 = scmp.eq.s32.totalorder %s33, 0
      %p290 = por %p288, %p289
      %p291 = scmp.ne.s32.totalorder %s279, %s280
      %p292 = scmp.eq.s32.totalorder %s34, 5
      %p293 = por %p291, %p292
      %p295 = scmp.ne.s32.totalorder %s280, %s294
      %p296 = scmp.eq.s32.totalorder %s34, 0
      %p297 = por %p295, %p296
      %p298 = scmp.le.s32.totalorder 1, %s28
      %p299 = scmp.lt.s32.totalorder %s28, 7
      %p300 = pnand %p298, %p299
      %p301 = pneg %p300
      // Predicated region
      $region9: #{tpu_custom_call.1} parent=5 // pred_check
        _
      $region10: #{tpu_custom_call.1} parent=5 // pred_check_branch
        %303 = sbr.rel (%p300) target = $region12
      $region11: #{tpu_custom_call.1} parent=5 // pred_region
        %s304 = ssub.s32 %s28, 1
        // Predicated region
        $region13: #{tpu_custom_call.1} parent=11 // pred_check
          %p305 = pneg %p49
        $region14: #{tpu_custom_call.1} parent=11 // pred_check_branch
          %307 = sbr.rel (%p305) target = $region16
        $region15: #{tpu_custom_call.1} parent=11 // pred_region
          %s309 = ssub.s32 256, 256
          %310 = vsyncadd [#allocation4], %s309
          %s311 = sshll.u32 [#allocation3], 4
          %s312 = int_to_ptr.vmem [resolvable:$true] %s311
          %317 = dma.hbm_to_vmem [thread:$0]  %s0, 256, %s312, [#allocation4], 128, 128, 8
        $region16: #{tpu_custom_call.1} parent=11 // pred_fallthru
          _
        // Predicated region
        $region17: #{tpu_custom_call.1} parent=11 // pred_check
          %p318 = pneg %p96
        $region18: #{tpu_custom_call.1} parent=11 // pred_check_branch
          %320 = sbr.rel (%p318) target = $region20
        $region19: #{tpu_custom_call.1} parent=11 // pred_region
          %s322 = ssub.s32 6144, 6144
          %323 = vsyncadd [#allocation7], %s322
          %s324 = sshll.u32 [#allocation8], 4
          %s325 = int_to_ptr.vmem [resolvable:$true] %s324
          %330 = dma.hbm_to_vmem [thread:$0]  %s2, 6144, %s325, [#allocation7], 384, 384, 24
        $region20: #{tpu_custom_call.1} parent=11 // pred_fallthru
          _
        // Predicated region
        $region21: #{tpu_custom_call.1} parent=11 // pred_check
          %p331 = pneg %p117
        $region22: #{tpu_custom_call.1} parent=11 // pred_check_branch
          %333 = sbr.rel (%p331) target = $region24
        $region23: #{tpu_custom_call.1} parent=11 // pred_region
          %s335 = ssub.s32 6144, 6144
          %336 = vsyncadd [#allocation10], %s335
          %s337 = sshll.u32 [#allocation9], 4
          %s338 = int_to_ptr.vmem [resolvable:$true] %s337
          %343 = dma.hbm_to_vmem [thread:$0]  %s3, 6144, %s338, [#allocation10], 384, 384, 24
        $region24: #{tpu_custom_call.1} parent=11 // pred_fallthru
          _
        // Predicated region
        $region25: #{tpu_custom_call.1} parent=11 // pred_check
          %p344 = pneg %p138
        $region26: #{tpu_custom_call.1} parent=11 // pred_check_branch
          %346 = sbr.rel (%p344) target = $region28
        $region27: #{tpu_custom_call.1} parent=11 // pred_region
          _
        $region28: #{tpu_custom_call.1} parent=11 // pred_fallthru
          _
        // Predicated region
        $region29: #{tpu_custom_call.1} parent=11 // pred_check
          %p347 = pneg %p159
        $region30: #{tpu_custom_call.1} parent=11 // pred_check_branch
          %349 = sbr.rel (%p347) target = $region32
        $region31: #{tpu_custom_call.1} parent=11 // pred_region
          %s351 = ssub.s32 6144, 6144
          %352 = vsyncadd [#allocation10], %s351
          %s353 = sshll.u32 [#allocation11], 4
          %s354 = int_to_ptr.vmem [resolvable:$true] %s353
          %359 = dma.hbm_to_vmem [thread:$0]  %s5, 6144, %s354, [#allocation10], 384, 384, 24
        $region32: #{tpu_custom_call.1} parent=11 // pred_fallthru
          _
        // Predicated region
        $region33: #{tpu_custom_call.1} parent=11 // pred_check
          %p360 = pneg %p180
        $region34: #{tpu_custom_call.1} parent=11 // pred_check_branch
          %362 = sbr.rel (%p360) target = $region36
        $region35: #{tpu_custom_call.1} parent=11 // pred_region
          %s364 = ssub.s32 6144, 6144
          %365 = vsyncadd [#allocation13], %s364
          %s366 = sshll.u32 [#allocation12], 4
          %s367 = int_to_ptr.vmem [resolvable:$true] %s366
          %372 = dma.hbm_to_vmem [thread:$0]  %s6, 6144, %s367, [#allocation13], 384, 384, 24
        $region36: #{tpu_custom_call.1} parent=11 // pred_fallthru
          _
        // Predicated region
        $region37: #{tpu_custom_call.1} parent=11 // pred_check
          %p373 = pneg %p201
        $region38: #{tpu_custom_call.1} parent=11 // pred_check_branch
          %375 = sbr.rel (%p373) target = $region40
        $region39: #{tpu_custom_call.1} parent=11 // pred_region
          _
        $region40: #{tpu_custom_call.1} parent=11 // pred_fallthru
          _
        // Predicated region
        $region41: #{tpu_custom_call.1} parent=11 // pred_check
          %p376 = pneg %p222
        $region42: #{tpu_custom_call.1} parent=11 // pred_check_branch
          %378 = sbr.rel (%p376) target = $region44
        $region43: #{tpu_custom_call.1} parent=11 // pred_region
          %s380 = ssub.s32 2048, 2048
          %381 = vsyncadd [#allocation13], %s380
          %s382 = sshll.u32 [#allocation14], 4
          %s383 = int_to_ptr.vmem [resolvable:$true] %s382
          %388 = dma.hbm_to_vmem [thread:$0]  %s8, 2048, %s383, [#allocation13], 128, 128, 8
        $region44: #{tpu_custom_call.1} parent=11 // pred_fallthru
          _
        // Predicated region
        $region45: #{tpu_custom_call.1} parent=11 // pred_check
          %p389 = pneg %p243
        $region46: #{tpu_custom_call.1} parent=11 // pred_check_branch
          %391 = sbr.rel (%p389) target = $region48
        $region47: #{tpu_custom_call.1} parent=11 // pred_region
          _
        $region48: #{tpu_custom_call.1} parent=11 // pred_fallthru
          _
      $region12: #{tpu_custom_call.1} parent=5 // pred_fallthru
        _
      %p392 = scmp.lt.s32.totalorder %s28, 6
      // Predicated region
      $region49: #{tpu_custom_call.1} parent=5 // pred_check
        %p393 = pneg %p392
      $region50: #{tpu_custom_call.1} parent=5 // pred_check_branch
        %395 = sbr.rel (%p393) target = $region52
      $region51: #{tpu_custom_call.1} parent=5 // pred_region
        // Predicated region
        $region53: #{tpu_custom_call.1} parent=51 // pred_check
          %p396 = pneg %p69
        $region54: #{tpu_custom_call.1} parent=51 // pred_check_branch
          %398 = sbr.rel (%p396) target = $region56
        $region55: #{tpu_custom_call.1} parent=51 // pred_region
          %s399 = sand.u32 %s28, 1
          %s400 = scalar_lea.sflag [#allocation7], %s399
          %s401 = sand.u32 %s59, 1
          %s402 = smul.addr %s401, 8
          %s403 = scalar_lea.vmem [#allocation6], %s402
          %s405 = ssub.s32 128, 128
          %406 = vsyncadd %s400, %s405
          %s407 = smul.addr %s28, 128
          %s408 = scalar_lea.hbm %s1, %s407
          %s410 = sshll.u32 %s403, 4
          %s411 = int_to_ptr.vmem [resolvable:$true] %s410
          %413 = dma.hbm_to_vmem [thread:$0]  %s408, 128, %s411, %s400
        $region56: #{tpu_custom_call.1} parent=51 // pred_fallthru
          _
      $region52: #{tpu_custom_call.1} parent=5 // pred_fallthru
        _
      %p414 = scmp.le.s32.totalorder 1, %s28
      %p415 = scmp.lt.s32.totalorder %s28, 7
      %p416 = pnand %p414, %p415
      %p417 = pneg %p416
      // Predicated region
      $region57: #{tpu_custom_call.1} parent=5 // pred_check
        _
      $region58: #{tpu_custom_call.1} parent=5 // pred_check_branch
        %419 = sbr.rel (%p416) target = $region60
      $region59: #{tpu_custom_call.1} parent=5 // pred_region
        %s420 = ssub.s32 %s28, 1
        // Predicated region
        $region61: #{tpu_custom_call.1} parent=59 // pred_check
          %p421 = pneg %p49
        $region62: #{tpu_custom_call.1} parent=59 // pred_check_branch
          %423 = sbr.rel (%p421) target = $region64
        $region63: #{tpu_custom_call.1} parent=59 // pred_region
          %424 = dma.done [#allocation4], 256
        $region64: #{tpu_custom_call.1} parent=59 // pred_fallthru
          _
        %s425 = sand.u32 %s33, 1
        %s426 = scalar_lea.sflag [#allocation7], %s425
        %s427 = sand.u32 %s62, 1
        %s428 = smul.addr %s427, 8
        %s429 = scalar_lea.vmem [#allocation6], %s428
        // Predicated region
        $region65: #{tpu_custom_call.1} parent=59 // pred_check
          %p430 = pneg %p75
        $region66: #{tpu_custom_call.1} parent=59 // pred_check_branch
          %432 = sbr.rel (%p430) target = $region68
        $region67: #{tpu_custom_call.1} parent=59 // pred_region
          %433 = dma.done %s426, 128
        $region68: #{tpu_custom_call.1} parent=59 // pred_fallthru
          _
        // Predicated region
        $region69: #{tpu_custom_call.1} parent=59 // pred_check
          %p434 = pneg %p96
        $region70: #{tpu_custom_call.1} parent=59 // pred_check_branch
          %436 = sbr.rel (%p434) target = $region72
        $region71: #{tpu_custom_call.1} parent=59 // pred_region
          %437 = dma.done [#allocation7], 6144
        $region72: #{tpu_custom_call.1} parent=59 // pred_fallthru
          _
        // Predicated region
        $region73: #{tpu_custom_call.1} parent=59 // pred_check
          %p438 = pneg %p117
        $region74: #{tpu_custom_call.1} parent=59 // pred_check_branch
          %440 = sbr.rel (%p438) target = $region76
        $region75: #{tpu_custom_call.1} parent=59 // pred_region
          %441 = dma.done [#allocation10], 6144
        $region76: #{tpu_custom_call.1} parent=59 // pred_fallthru
          _
        // Predicated region
        $region77: #{tpu_custom_call.1} parent=59 // pred_check
          %p442 = pneg %p159
        $region78: #{tpu_custom_call.1} parent=59 // pred_check_branch
          %444 = sbr.rel (%p442) target = $region80
        $region79: #{tpu_custom_call.1} parent=59 // pred_region
          %445 = dma.done [#allocation10], 6144
        $region80: #{tpu_custom_call.1} parent=59 // pred_fallthru
          _
        // Predicated region
        $region81: #{tpu_custom_call.1} parent=59 // pred_check
          %p446 = pneg %p180
        $region82: #{tpu_custom_call.1} parent=59 // pred_check_branch
          %448 = sbr.rel (%p446) target = $region84
        $region83: #{tpu_custom_call.1} parent=59 // pred_region
          %449 = dma.done [#allocation13], 6144
        $region84: #{tpu_custom_call.1} parent=59 // pred_fallthru
          _
        // Predicated region
        $region85: #{tpu_custom_call.1} parent=59 // pred_check
          %p450 = pneg %p222
        $region86: #{tpu_custom_call.1} parent=59 // pred_check_branch
          %452 = sbr.rel (%p450) target = $region88
        $region87: #{tpu_custom_call.1} parent=59 // pred_region
          %453 = dma.done [#allocation13], 2048
        $region88: #{tpu_custom_call.1} parent=59 // pred_fallthru
          _
        %p454 = pneg %p49
        %p455 = pneg %p46
        %s456 = sand.u32 %s33, 1
        %s457 = scalar_lea.sflag [#allocation7], %s456
        %s458 = sand.u32 %s62, 1
        %s459 = smul.addr %s458, 8
        %s460 = scalar_lea.vmem [#allocation6], %s459
        %p461 = pneg %p75
        %p462 = pneg %p72
        %p463 = pneg %p96
        %p464 = pneg %p93
        %p465 = pneg %p117
        %p466 = pneg %p114
        %p467 = pneg %p138
        %p468 = pneg %p135
        %p469 = pneg %p159
        %p470 = pneg %p156
        %p471 = pneg %p180
        %p472 = pneg %p177
        %p473 = pneg %p201
        %p474 = pneg %p198
        %p475 = pneg %p222
        %p476 = pneg %p219
        %p477 = pneg %p243
        %p478 = pneg %p240
        %p479 = pneg %p269
        %p480 = pneg %p266
        %s481 = sand.u32 %s256, 1
        %s482 = scalar_lea.sflag [#allocation5], %s481
        %s483 = sand.u32 %s256, 1
        %s484 = smul.addr %s483, 8
        %s485 = scalar_lea.vmem [#allocation15], %s484
        %p486 = pneg %p290
        %p487 = pneg %p287
        %p488 = scmp.eq.s32.totalorder %s33, 0
        // Predicated region
        $region89: #{tpu_custom_call.1} parent=59 // pred_check
          %p489 = pneg %p488
        $region90: #{tpu_custom_call.1} parent=59 // pred_check_branch
          %491 = sbr.rel (%p489) target = $region92
        $region91: #{tpu_custom_call.1} parent=59 // pred_region
          %v492 = vld [vmem:[#allocation3] sm:$0xff]
          %v493 = vld [vmem:[#allocation3 + $0x8] sm:$0xff]
          %494 = vst [vmem:[#allocation2] sm:$0xff] %v492
          %495 = vst [vmem:[#allocation2 + $0x8] sm:$0xff] %v493
        $region92: #{tpu_custom_call.1} parent=59 // pred_fallthru
          _
        %v496 = vld [vmem:[%s429] sm:$0xff]
        %v497 = vld [vmem:[#allocation2] sm:$0xff]
        %v498 = vld [vmem:[#allocation8] sm:$0xff]
        %v499 = vld [vmem:[#allocation8 + $0x8] sm:$0xff]
        %v500 = vld [vmem:[#allocation8 + $0x10] sm:$0xff]
        %v501 = vld [vmem:[#allocation8 + $0x18] sm:$0xff]
        %v502 = vld [vmem:[#allocation8 + $0x20] sm:$0xff]
        %v503 = vld [vmem:[#allocation8 + $0x28] sm:$0xff]
        %v504 = vld [vmem:[#allocation8 + $0x30] sm:$0xff]
        %v505 = vld [vmem:[#allocation8 + $0x38] sm:$0xff]
        %v506 = vld [vmem:[#allocation8 + $0x40] sm:$0xff]
        %v507 = vld [vmem:[#allocation8 + $0x48] sm:$0xff]
        %v508 = vld [vmem:[#allocation8 + $0x50] sm:$0xff]
        %v509 = vld [vmem:[#allocation8 + $0x58] sm:$0xff]
        %v510 = vld [vmem:[#allocation8 + $0x60] sm:$0xff]
        %v511 = vld [vmem:[#allocation8 + $0x68] sm:$0xff]
        %v512 = vld [vmem:[#allocation8 + $0x70] sm:$0xff]
        %v513 = vld [vmem:[#allocation8 + $0x78] sm:$0xff]
        %v514 = vld [vmem:[#allocation8 + $0x80] sm:$0xff]
        %v515 = vld [vmem:[#allocation8 + $0x88] sm:$0xff]
        %v516 = vld [vmem:[#allocation8 + $0x90] sm:$0xff]
        %v517 = vld [vmem:[#allocation8 + $0x98] sm:$0xff]
        %v518 = vld [vmem:[#allocation8 + $0xa0] sm:$0xff]
        %v519 = vld [vmem:[#allocation8 + $0xa8] sm:$0xff]
        %v520 = vld [vmem:[#allocation8 + $0xb0] sm:$0xff]
        %v521 = vld [vmem:[#allocation8 + $0xb8] sm:$0xff]
        %v522 = vld [vmem:[#allocation8 + $0xc0] sm:$0xff]
        %v523 = vld [vmem:[#allocation8 + $0xc8] sm:$0xff]
        %v524 = vld [vmem:[#allocation8 + $0xd0] sm:$0xff]
        %v525 = vld [vmem:[#allocation8 + $0xd8] sm:$0xff]
        %v526 = vld [vmem:[#allocation8 + $0xe0] sm:$0xff]
        %v527 = vld [vmem:[#allocation8 + $0xe8] sm:$0xff]
        %v528 = vld [vmem:[#allocation8 + $0xf0] sm:$0xff]
        %v529 = vld [vmem:[#allocation8 + $0xf8] sm:$0xff]
        %v530 = vld [vmem:[#allocation8 + $0x100] sm:$0xff]
        %v531 = vld [vmem:[#allocation8 + $0x108] sm:$0xff]
        %v532 = vld [vmem:[#allocation8 + $0x110] sm:$0xff]
        %v533 = vld [vmem:[#allocation8 + $0x118] sm:$0xff]
        %v534 = vld [vmem:[#allocation8 + $0x120] sm:$0xff]
        %v535 = vld [vmem:[#allocation8 + $0x128] sm:$0xff]
        %v536 = vld [vmem:[#allocation8 + $0x130] sm:$0xff]
        %v537 = vld [vmem:[#allocation8 + $0x138] sm:$0xff]
        %v538 = vld [vmem:[#allocation8 + $0x140] sm:$0xff]
        %v539 = vld [vmem:[#allocation8 + $0x148] sm:$0xff]
        %v540 = vld [vmem:[#allocation8 + $0x150] sm:$0xff]
        %v541 = vld [vmem:[#allocation8 + $0x158] sm:$0xff]
        %v542 = vld [vmem:[#allocation8 + $0x160] sm:$0xff]
        %v543 = vld [vmem:[#allocation8 + $0x168] sm:$0xff]
        %v544 = vld [vmem:[#allocation8 + $0x170] sm:$0xff]
        %v545 = vld [vmem:[#allocation8 + $0x178] sm:$0xff]
        %v546 = vld [vmem:[%s4] sm:$0x7]
        %v548 = vlaneseq
        %v549 = vshrl.u32 %v548, 7
        %v550 = vsub.s32 0, %v549
        %v551 = vrot.slane %v546, %v550
        %v552 = vlaneseq
        %v553 = vshrl.u32 %v552, 7
        %v554 = vsub.s32 1, %v553
        %v555 = vrot.slane %v546, %v554
        %v556 = vlaneseq
        %v557 = vshrl.u32 %v556, 7
        %v558 = vsub.s32 2, %v557
        %v559 = vrot.slane %v546, %v558
        %563 = vmatprep.subr.mxu0 %v499
        %564 = vmatpush1.msra.mxu0 %v498
        %565 = vmatprep.subr.mxu0 %v502
        %566 = vmatpush1.msra.mxu0 %v501
        %567 = vmatprep.subr.mxu0 %v505
        %568 = vmatpush1.msra.mxu0 %v504
        %569 = vmatprep.subr.mxu0 %v508
        %570 = vmatpush1.msra.mxu0 %v507
        %571 = vmatprep.subr.mxu0 %v511
        %572 = vmatpush1.msra.mxu0 %v510
        %573 = vmatprep.subr.mxu0 %v514
        %574 = vmatpush1.msra.mxu0 %v513
        %575 = vmatprep.subr.mxu0 %v517
        %576 = vmatpush1.msra.mxu0 %v516
        %577 = vmatprep.subr.mxu0 %v520
        %578 = vmatpush1.msra.mxu0 %v519
        %579 = vmatprep.subr.mxu0 %v523
        %580 = vmatpush1.msra.mxu0 %v522
        %581 = vmatprep.subr.mxu0 %v526
        %582 = vmatpush1.msra.mxu0 %v525
        %583 = vmatprep.subr.mxu0 %v529
        %584 = vmatpush1.msra.mxu0 %v528
        %585 = vmatprep.subr.mxu0 %v532
        %586 = vmatpush1.msra.mxu0 %v531
        %587 = vmatprep.subr.mxu0 %v535
        %588 = vmatpush1.msra.mxu0 %v534
        %589 = vmatprep.subr.mxu0 %v538
        %590 = vmatpush1.msra.mxu0 %v537
        %591 = vmatprep.subr.mxu0 %v541
        %592 = vmatpush1.msra.mxu0 %v540
        %593 = vmatprep.subr.mxu0 %v544
        %594 = vmatpush1.msra.mxu0 %v543
        %595 = vmatprep.subr.mxu0 0.0
        %596 = vmatpush1.msra.mxu0 0.0
        %597 = vmatprep.subr.mxu0 0.0
        %598 = vmatpush1.msra.mxu0 0.0
        %599 = vmatprep.subr.mxu0 0.0
        %600 = vmatpush1.msra.mxu0 0.0
        %601 = vmatprep.subr.mxu0 0.0
        %602 = vmatpush1.msra.mxu0 0.0
        %603 = vmatprep.subr.mxu0 0.0
        %604 = vmatpush1.msra.mxu0 0.0
        %605 = vmatprep.subr.mxu0 0.0
        %606 = vmatpush1.msra.mxu0 0.0
        %607 = vmatprep.subr.mxu0 0.0
        %608 = vmatpush1.msra.mxu0 0.0
        %609 = vmatprep.subr.mxu0 0.0
        %610 = vmatpush1.msra.mxu0 0.0
        %611 = vmatprep.subr.mxu0 0.0
        %612 = vmatpush1.msra.mxu0 0.0
        %613 = vmatprep.subr.mxu0 0.0
        %614 = vmatpush1.msra.mxu0 0.0
        %615 = vmatprep.subr.mxu0 0.0
        %616 = vmatpush1.msra.mxu0 0.0
        %617 = vmatprep.subr.mxu0 0.0
        %618 = vmatpush1.msra.mxu0 0.0
        %619 = vmatprep.subr.mxu0 0.0
        %620 = vmatpush1.msra.mxu0 0.0
        %621 = vmatprep.subr.mxu0 0.0
        %622 = vmatpush1.msra.mxu0 0.0
        %623 = vmatprep.subr.mxu0 0.0
        %624 = vmatpush1.msra.mxu0 0.0
        %625 = vmatprep.subr.mxu0 0.0
        %626 = vmatpush1.msra.mxu0 0.0
        %627 = vmatprep.mubr.f32.mxu0 0.0
        %628 = vmatmul.mubr.f32.gmra.mrb[0].mxu0 %v496
        %v629 = vpop.f32.mrb[0].mxu0
        %v630 = vadd.f32 %v551, %v629
        %v631 = vpop.f32.mrb[0].mxu0
        %v632 = vadd.f32 %v555, %v631
        %633 = vdwg.mxu0
        %634 = vmatprep.subr.mxu0 0.0
        %635 = vmatpush1.msra.mxu0 %v500
        %636 = vmatprep.subr.mxu0 0.0
        %637 = vmatpush1.msra.mxu0 %v503
        %638 = vmatprep.subr.mxu0 0.0
        %639 = vmatpush1.msra.mxu0 %v506
        %640 = vmatprep.subr.mxu0 0.0
        %641 = vmatpush1.msra.mxu0 %v509
        %642 = vmatprep.subr.mxu0 0.0
        %643 = vmatpush1.msra.mxu0 %v512
        %644 = vmatprep.subr.mxu0 0.0
        %645 = vmatpush1.msra.mxu0 %v515
        %646 = vmatprep.subr.mxu0 0.0
        %647 = vmatpush1.msra.mxu0 %v518
        %648 = vmatprep.subr.mxu0 0.0
        %649 = vmatpush1.msra.mxu0 %v521
        %650 = vmatprep.subr.mxu0 0.0
        %651 = vmatpush1.msra.mxu0 %v524
        %652 = vmatprep.subr.mxu0 0.0
        %653 = vmatpush1.msra.mxu0 %v527
        %654 = vmatprep.subr.mxu0 0.0
        %655 = vmatpush1.msra.mxu0 %v530
        %656 = vmatprep.subr.mxu0 0.0
        %657 = vmatpush1.msra.mxu0 %v533
        %658 = vmatprep.subr.mxu0 0.0
        %659 = vmatpush1.msra.mxu0 %v536
        %660 = vmatprep.subr.mxu0 0.0
        %661 = vmatpush1.msra.mxu0 %v539
        %662 = vmatprep.subr.mxu0 0.0
        %663 = vmatpush1.msra.mxu0 %v542
        %664 = vmatprep.subr.mxu0 0.0
        %665 = vmatpush1.msra.mxu0 %v545
        %666 = vmatprep.subr.mxu0 0.0
        %667 = vmatpush1.msra.mxu0 0.0
        %668 = vmatprep.subr.mxu0 0.0
        %669 = vmatpush1.msra.mxu0 0.0
        %670 = vmatprep.subr.mxu0 0.0
        %671 = vmatpush1.msra.mxu0 0.0
        %672 = vmatprep.subr.mxu0 0.0
        %673 = vmatpush1.msra.mxu0 0.0
        %674 = vmatprep.subr.mxu0 0.0
        %675 = vmatpush1.msra.mxu0 0.0
        %676 = vmatprep.subr.mxu0 0.0
        %677 = vmatpush1.msra.mxu0 0.0
        %678 = vmatprep.subr.mxu0 0.0
        %679 = vmatpush1.msra.mxu0 0.0
        %680 = vmatprep.subr.mxu0 0.0
        %681 = vmatpush1.msra.mxu0 0.0
        %682 = vmatprep.subr.mxu0 0.0
        %683 = vmatpush1.msra.mxu0 0.0
        %684 = vmatprep.subr.mxu0 0.0
        %685 = vmatpush1.msra.mxu0 0.0
        %686 = vmatprep.subr.mxu0 0.0
        %687 = vmatpush1.msra.mxu0 0.0
        %688 = vmatprep.subr.mxu0 0.0
        %689 = vmatpush1.msra.mxu0 0.0
        %690 = vmatprep.subr.mxu0 0.0
        %691 = vmatpush1.msra.mxu0 0.0
        %692 = vmatprep.subr.mxu0 0.0
        %693 = vmatpush1.msra.mxu0 0.0
        %694 = vmatprep.subr.mxu0 0.0
        %695 = vmatpush1.msra.mxu0 0.0
        %696 = vmatprep.subr.mxu0 0.0
        %697 = vmatpush1.msra.mxu0 0.0
        %698 = vmatprep.mubr.f32.mxu0 0.0
        %699 = vmatmul.mubr.f32.gmra.mrb[0].mxu0 %v496
        %v700 = vpop.f32.mrb[0].mxu0
        %v701 = vadd.f32 %v559, %v700
        %v702 = vpop.f32.mrb[0].mxu0
        %703 = vdwg.mxu0
        %v704 = vld [vmem:[#allocation9] sm:$0xff]
        %v705 = vld [vmem:[#allocation9 + $0x8] sm:$0xff]
        %v706 = vld [vmem:[#allocation9 + $0x18] sm:$0xff]
        %v707 = vld [vmem:[#allocation9 + $0x20] sm:$0xff]
        %v708 = vld [vmem:[#allocation9 + $0x30] sm:$0xff]
        %v709 = vld [vmem:[#allocation9 + $0x38] sm:$0xff]
        %v710 = vld [vmem:[#allocation9 + $0x48] sm:$0xff]
        %v711 = vld [vmem:[#allocation9 + $0x50] sm:$0xff]
        %v712 = vld [vmem:[#allocation9 + $0x60] sm:$0xff]
        %v713 = vld [vmem:[#allocation9 + $0x68] sm:$0xff]
        %v714 = vld [vmem:[#allocation9 + $0x78] sm:$0xff]
        %v715 = vld [vmem:[#allocation9 + $0x80] sm:$0xff]
        %v716 = vld [vmem:[#allocation9 + $0x90] sm:$0xff]
        %v717 = vld [vmem:[#allocation9 + $0x98] sm:$0xff]
        %v718 = vld [vmem:[#allocation9 + $0xa8] sm:$0xff]
        %v719 = vld [vmem:[#allocation9 + $0xb0] sm:$0xff]
        %v720 = vld [vmem:[#allocation9 + $0xc0] sm:$0xff]
        %v721 = vld [vmem:[#allocation9 + $0xc8] sm:$0xff]
        %v722 = vld [vmem:[#allocation9 + $0xd8] sm:$0xff]
        %v723 = vld [vmem:[#allocation9 + $0xe0] sm:$0xff]
        %v724 = vld [vmem:[#allocation9 + $0xf0] sm:$0xff]
        %v725 = vld [vmem:[#allocation9 + $0xf8] sm:$0xff]
        %v726 = vld [vmem:[#allocation9 + $0x108] sm:$0xff]
        %v727 = vld [vmem:[#allocation9 + $0x110] sm:$0xff]
        %v728 = vld [vmem:[#allocation9 + $0x120] sm:$0xff]
        %v729 = vld [vmem:[#allocation9 + $0x128] sm:$0xff]
        %v730 = vld [vmem:[#allocation9 + $0x138] sm:$0xff]
        %v731 = vld [vmem:[#allocation9 + $0x140] sm:$0xff]
        %v732 = vld [vmem:[#allocation9 + $0x150] sm:$0xff]
        %v733 = vld [vmem:[#allocation9 + $0x158] sm:$0xff]
        %v734 = vld [vmem:[#allocation9 + $0x168] sm:$0xff]
        %v735 = vld [vmem:[#allocation9 + $0x170] sm:$0xff]
        %736 = vmatprep.subr.mxu0 %v705
        %737 = vmatpush1.msra.mxu0 %v704
        %738 = vmatprep.subr.mxu0 %v707
        %739 = vmatpush1.msra.mxu0 %v706
        %740 = vmatprep.subr.mxu0 %v709
        %741 = vmatpush1.msra.mxu0 %v708
        %742 = vmatprep.subr.mxu0 %v711
        %743 = vmatpush1.msra.mxu0 %v710
        %744 = vmatprep.subr.mxu0 %v713
        %745 = vmatpush1.msra.mxu0 %v712
        %746 = vmatprep.subr.mxu0 %v715
        %747 = vmatpush1.msra.mxu0 %v714
        %748 = vmatprep.subr.mxu0 %v717
        %749 = vmatpush1.msra.mxu0 %v716
        %750 = vmatprep.subr.mxu0 %v719
        %751 = vmatpush1.msra.mxu0 %v718
        %752 = vmatprep.subr.mxu0 %v721
        %753 = vmatpush1.msra.mxu0 %v720
        %754 = vmatprep.subr.mxu0 %v723
        %755 = vmatpush1.msra.mxu0 %v722
        %756 = vmatprep.subr.mxu0 %v725
        %757 = vmatpush1.msra.mxu0 %v724
        %758 = vmatprep.subr.mxu0 %v727
        %759 = vmatpush1.msra.mxu0 %v726
        %760 = vmatprep.subr.mxu0 %v729
        %761 = vmatpush1.msra.mxu0 %v728
        %762 = vmatprep.subr.mxu0 %v731
        %763 = vmatpush1.msra.mxu0 %v730
        %764 = vmatprep.subr.mxu0 %v733
        %765 = vmatpush1.msra.mxu0 %v732
        %766 = vmatprep.subr.mxu0 %v735
        %767 = vmatpush1.msra.mxu0 %v734
        %768 = vmatprep.subr.mxu0 0.0
        %769 = vmatpush1.msra.mxu0 0.0
        %770 = vmatprep.subr.mxu0 0.0
        %771 = vmatpush1.msra.mxu0 0.0
        %772 = vmatprep.subr.mxu0 0.0
        %773 = vmatpush1.msra.mxu0 0.0
        %774 = vmatprep.subr.mxu0 0.0
        %775 = vmatpush1.msra.mxu0 0.0
        %776 = vmatprep.subr.mxu0 0.0
        %777 = vmatpush1.msra.mxu0 0.0
        %778 = vmatprep.subr.mxu0 0.0
        %779 = vmatpush1.msra.mxu0 0.0
        %780 = vmatprep.subr.mxu0 0.0
        %781 = vmatpush1.msra.mxu0 0.0
        %782 = vmatprep.subr.mxu0 0.0
        %783 = vmatpush1.msra.mxu0 0.0
        %784 = vmatprep.subr.mxu0 0.0
        %785 = vmatpush1.msra.mxu0 0.0
        %786 = vmatprep.subr.mxu0 0.0
        %787 = vmatpush1.msra.mxu0 0.0
        %788 = vmatprep.subr.mxu0 0.0
        %789 = vmatpush1.msra.mxu0 0.0
        %790 = vmatprep.subr.mxu0 0.0
        %791 = vmatpush1.msra.mxu0 0.0
        %792 = vmatprep.subr.mxu0 0.0
        %793 = vmatpush1.msra.mxu0 0.0
        %794 = vmatprep.subr.mxu0 0.0
        %795 = vmatpush1.msra.mxu0 0.0
        %796 = vmatprep.subr.mxu0 0.0
        %797 = vmatpush1.msra.mxu0 0.0
        %798 = vmatprep.subr.mxu0 0.0
        %799 = vmatpush1.msra.mxu0 0.0
        %800 = vmatprep.mubr.f32.mxu0 0.0
        %801 = vmatmul.mubr.f32.gmra.mrb[0].mxu0 %v497
        %v802 = vpop.f32.mrb[0].mxu0
        %v803 = vadd.f32 0.0, %v802
        %v804 = vpop.f32.mrb[0].mxu0
        %v805 = vadd.f32 0.0, %v804
        %806 = vdwg.mxu0
        %v807 = vadd.f32 %v630, %v803
        %v808 = vxor.u32 %v807, 2147483648
        %v809 = vmul.f32 %v808, 1.442695
        %v810 = vpow.pop %v809
        %v811 = vadd.f32 %v810, 1.0
        %v812 = vrcp.pop %v811
        %v813 = vmul.f32 1.0, %v812
        %v814 = vadd.f32 %v632, %v805
        %v815 = vxor.u32 %v814, 2147483648
        %v816 = vmul.f32 %v815, 1.442695
        %v817 = vpow.pop %v816
        %v818 = vadd.f32 %v817, 1.0
        %v819 = vrcp.pop %v818
        %v820 = vmul.f32 1.0, %v819
        %v821 = vmul.f32 %v820, %v497
        %v822 = vld [vmem:[#allocation9 + $0x10] sm:$0xff]
        %v823 = vld [vmem:[#allocation9 + $0x28] sm:$0xff]
        %v824 = vld [vmem:[#allocation9 + $0x40] sm:$0xff]
        %v825 = vld [vmem:[#allocation9 + $0x58] sm:$0xff]
        %v826 = vld [vmem:[#allocation9 + $0x70] sm:$0xff]
        %v827 = vld [vmem:[#allocation9 + $0x88] sm:$0xff]
        %v828 = vld [vmem:[#allocation9 + $0xa0] sm:$0xff]
        %v829 = vld [vmem:[#allocation9 + $0xb8] sm:$0xff]
        %v830 = vld [vmem:[#allocation9 + $0xd0] sm:$0xff]
        %v831 = vld [vmem:[#allocation9 + $0xe8] sm:$0xff]
        %v832 = vld [vmem:[#allocation9 + $0x100] sm:$0xff]
        %v833 = vld [vmem:[#allocation9 + $0x118] sm:$0xff]
        %v834 = vld [vmem:[#allocation9 + $0x130] sm:$0xff]
        %v835 = vld [vmem:[#allocation9 + $0x148] sm:$0xff]
        %v836 = vld [vmem:[#allocation9 + $0x160] sm:$0xff]
        %v837 = vld [vmem:[#allocation9 + $0x178] sm:$0xff]
        %838 = vmatprep.subr.mxu0 0.0
        %839 = vmatpush1.msra.mxu0 %v822
        %840 = vmatprep.subr.mxu0 0.0
        %841 = vmatpush1.msra.mxu0 %v823
        %842 = vmatprep.subr.mxu0 0.0
        %843 = vmatpush1.msra.mxu0 %v824
        %844 = vmatprep.subr.mxu0 0.0
        %845 = vmatpush1.msra.mxu0 %v825
        %846 = vmatprep.subr.mxu0 0.0
        %847 = vmatpush1.msra.mxu0 %v826
        %848 = vmatprep.subr.mxu0 0.0
        %849 = vmatpush1.msra.mxu0 %v827
        %850 = vmatprep.subr.mxu0 0.0
        %851 = vmatpush1.msra.mxu0 %v828
        %852 = vmatprep.subr.mxu0 0.0
        %853 = vmatpush1.msra.mxu0 %v829
        %854 = vmatprep.subr.mxu0 0.0
        %855 = vmatpush1.msra.mxu0 %v830
        %856 = vmatprep.subr.mxu0 0.0
        %857 = vmatpush1.msra.mxu0 %v831
        %858 = vmatprep.subr.mxu0 0.0
        %859 = vmatpush1.msra.mxu0 %v832
        %860 = vmatprep.subr.mxu0 0.0
        %861 = vmatpush1.msra.mxu0 %v833
        %862 = vmatprep.subr.mxu0 0.0
        %863 = vmatpush1.msra.mxu0 %v834
        %864 = vmatprep.subr.mxu0 0.0
        %865 = vmatpush1.msra.mxu0 %v835
        %866 = vmatprep.subr.mxu0 0.0
        %867 = vmatpush1.msra.mxu0 %v836
        %868 = vmatprep.subr.mxu0 0.0
        %869 = vmatpush1.msra.mxu0 %v837
        %870 = vmatprep.subr.mxu0 0.0
        %871 = vmatpush1.msra.mxu0 0.0
        %872 = vmatprep.subr.mxu0 0.0
        %873 = vmatpush1.msra.mxu0 0.0
        %874 = vmatprep.subr.mxu0 0.0
        %875 = vmatpush1.msra.mxu0 0.0
        %876 = vmatprep.subr.mxu0 0.0
        %877 = vmatpush1.msra.mxu0 0.0
        %878 = vmatprep.subr.mxu0 0.0
        %879 = vmatpush1.msra.mxu0 0.0
        %880 = vmatprep.subr.mxu0 0.0
        %881 = vmatpush1.msra.mxu0 0.0
        %882 = vmatprep.subr.mxu0 0.0
        %883 = vmatpush1.msra.mxu0 0.0
        %884 = vmatprep.subr.mxu0 0.0
        %885 = vmatpush1.msra.mxu0 0.0
        %886 = vmatprep.subr.mxu0 0.0
        %887 = vmatpush1.msra.mxu0 0.0
        %888 = vmatprep.subr.mxu0 0.0
        %889 = vmatpush1.msra.mxu0 0.0
        %890 = vmatprep.subr.mxu0 0.0
        %891 = vmatpush1.msra.mxu0 0.0
        %892 = vmatprep.subr.mxu0 0.0
        %893 = vmatpush1.msra.mxu0 0.0
        %894 = vmatprep.subr.mxu0 0.0
        %895 = vmatpush1.msra.mxu0 0.0
        %896 = vmatprep.subr.mxu0 0.0
        %897 = vmatpush1.msra.mxu0 0.0
        %898 = vmatprep.subr.mxu0 0.0
        %899 = vmatpush1.msra.mxu0 0.0
        %900 = vmatprep.subr.mxu0 0.0
        %901 = vmatpush1.msra.mxu0 0.0
        %902 = vmatprep.mubr.f32.mxu0 0.0
        %903 = vmatmul.mubr.f32.gmra.mrb[0].mxu0 %v821
        %v904 = vpop.f32.mrb[0].mxu0
        %v905 = vadd.f32 0.0, %v904
        %v906 = vpop.f32.mrb[0].mxu0
        %907 = vdwg.mxu0
        %v908 = vadd.f32 %v701, %v905
        %v909 = vtanh.pop %v908
        %v910 = vmul.f32 %v813, %v497
        %v911 = vsub.f32 1.0, %v813
        %v912 = vmul.f32 %v911, %v909
        %v913 = vadd.f32 %v910, %v912
        %914 = vst [vmem:[#allocation2] sm:$0xff] %v913
        %s915 = scalar_lea.vmem [#allocation2], 8
        %v916 = vld [vmem:[%s915] sm:$0xff]
        %v917 = vld [vmem:[#allocation11] sm:$0xff]
        %v918 = vld [vmem:[#allocation11 + $0x8] sm:$0xff]
        %v919 = vld [vmem:[#allocation11 + $0x10] sm:$0xff]
        %v920 = vld [vmem:[#allocation11 + $0x18] sm:$0xff]
        %v921 = vld [vmem:[#allocation11 + $0x20] sm:$0xff]
        %v922 = vld [vmem:[#allocation11 + $0x28] sm:$0xff]
        %v923 = vld [vmem:[#allocation11 + $0x30] sm:$0xff]
        %v924 = vld [vmem:[#allocation11 + $0x38] sm:$0xff]
        %v925 = vld [vmem:[#allocation11 + $0x40] sm:$0xff]
        %v926 = vld [vmem:[#allocation11 + $0x48] sm:$0xff]
        %v927 = vld [vmem:[#allocation11 + $0x50] sm:$0xff]
        %v928 = vld [vmem:[#allocation11 + $0x58] sm:$0xff]
        %v929 = vld [vmem:[#allocation11 + $0x60] sm:$0xff]
        %v930 = vld [vmem:[#allocation11 + $0x68] sm:$0xff]
        %v931 = vld [vmem:[#allocation11 + $0x70] sm:$0xff]
        %v932 = vld [vmem:[#allocation11 + $0x78] sm:$0xff]
        %v933 = vld [vmem:[#allocation11 + $0x80] sm:$0xff]
        %v934 = vld [vmem:[#allocation11 + $0x88] sm:$0xff]
        %v935 = vld [vmem:[#allocation11 + $0x90] sm:$0xff]
        %v936 = vld [vmem:[#allocation11 + $0x98] sm:$0xff]
        %v937 = vld [vmem:[#allocation11 + $0xa0] sm:$0xff]
        %v938 = vld [vmem:[#allocation11 + $0xa8] sm:$0xff]
        %v939 = vld [vmem:[#allocation11 + $0xb0] sm:$0xff]
        %v940 = vld [vmem:[#allocation11 + $0xb8] sm:$0xff]
        %v941 = vld [vmem:[#allocation11 + $0xc0] sm:$0xff]
        %v942 = vld [vmem:[#allocation11 + $0xc8] sm:$0xff]
        %v943 = vld [vmem:[#allocation11 + $0xd0] sm:$0xff]
        %v944 = vld [vmem:[#allocation11 + $0xd8] sm:$0xff]
        %v945 = vld [vmem:[#allocation11 + $0xe0] sm:$0xff]
        %v946 = vld [vmem:[#allocation11 + $0xe8] sm:$0xff]
        %v947 = vld [vmem:[#allocation11 + $0xf0] sm:$0xff]
        %v948 = vld [vmem:[#allocation11 + $0xf8] sm:$0xff]
        %v949 = vld [vmem:[#allocation11 + $0x100] sm:$0xff]
        %v950 = vld [vmem:[#allocation11 + $0x108] sm:$0xff]
        %v951 = vld [vmem:[#allocation11 + $0x110] sm:$0xff]
        %v952 = vld [vmem:[#allocation11 + $0x118] sm:$0xff]
        %v953 = vld [vmem:[#allocation11 + $0x120] sm:$0xff]
        %v954 = vld [vmem:[#allocation11 + $0x128] sm:$0xff]
        %v955 = vld [vmem:[#allocation11 + $0x130] sm:$0xff]
        %v956 = vld [vmem:[#allocation11 + $0x138] sm:$0xff]
        %v957 = vld [vmem:[#allocation11 + $0x140] sm:$0xff]
        %v958 = vld [vmem:[#allocation11 + $0x148] sm:$0xff]
        %v959 = vld [vmem:[#allocation11 + $0x150] sm:$0xff]
        %v960 = vld [vmem:[#allocation11 + $0x158] sm:$0xff]
        %v961 = vld [vmem:[#allocation11 + $0x160] sm:$0xff]
        %v962 = vld [vmem:[#allocation11 + $0x168] sm:$0xff]
        %v963 = vld [vmem:[#allocation11 + $0x170] sm:$0xff]
        %v964 = vld [vmem:[#allocation11 + $0x178] sm:$0xff]
        %v965 = vld [vmem:[%s7] sm:$0x7]
        %v967 = vlaneseq
        %v968 = vshrl.u32 %v967, 7
        %v969 = vsub.s32 0, %v968
        %v970 = vrot.slane %v965, %v969
        %v971 = vlaneseq
        %v972 = vshrl.u32 %v971, 7
        %v973 = vsub.s32 1, %v972
        %v974 = vrot.slane %v965, %v973
        %v975 = vlaneseq
        %v976 = vshrl.u32 %v975, 7
        %v977 = vsub.s32 2, %v976
        %v978 = vrot.slane %v965, %v977
        %982 = vmatprep.subr.mxu0 %v918
        %983 = vmatpush1.msra.mxu0 %v917
        %984 = vmatprep.subr.mxu0 %v921
        %985 = vmatpush1.msra.mxu0 %v920
        %986 = vmatprep.subr.mxu0 %v924
        %987 = vmatpush1.msra.mxu0 %v923
        %988 = vmatprep.subr.mxu0 %v927
        %989 = vmatpush1.msra.mxu0 %v926
        %990 = vmatprep.subr.mxu0 %v930
        %991 = vmatpush1.msra.mxu0 %v929
        %992 = vmatprep.subr.mxu0 %v933
        %993 = vmatpush1.msra.mxu0 %v932
        %994 = vmatprep.subr.mxu0 %v936
        %995 = vmatpush1.msra.mxu0 %v935
        %996 = vmatprep.subr.mxu0 %v939
        %997 = vmatpush1.msra.mxu0 %v938
        %998 = vmatprep.subr.mxu0 %v942
        %999 = vmatpush1.msra.mxu0 %v941
        %1000 = vmatprep.subr.mxu0 %v945
        %1001 = vmatpush1.msra.mxu0 %v944
        %1002 = vmatprep.subr.mxu0 %v948
        %1003 = vmatpush1.msra.mxu0 %v947
        %1004 = vmatprep.subr.mxu0 %v951
        %1005 = vmatpush1.msra.mxu0 %v950
        %1006 = vmatprep.subr.mxu0 %v954
        %1007 = vmatpush1.msra.mxu0 %v953
        %1008 = vmatprep.subr.mxu0 %v957
        %1009 = vmatpush1.msra.mxu0 %v956
        %1010 = vmatprep.subr.mxu0 %v960
        %1011 = vmatpush1.msra.mxu0 %v959
        %1012 = vmatprep.subr.mxu0 %v963
        %1013 = vmatpush1.msra.mxu0 %v962
        %1014 = vmatprep.subr.mxu0 0.0
        %1015 = vmatpush1.msra.mxu0 0.0
        %1016 = vmatprep.subr.mxu0 0.0
        %1017 = vmatpush1.msra.mxu0 0.0
        %1018 = vmatprep.subr.mxu0 0.0
        %1019 = vmatpush1.msra.mxu0 0.0
        %1020 = vmatprep.subr.mxu0 0.0
        %1021 = vmatpush1.msra.mxu0 0.0
        %1022 = vmatprep.subr.mxu0 0.0
        %1023 = vmatpush1.msra.mxu0 0.0
        %1024 = vmatprep.subr.mxu0 0.0
        %1025 = vmatpush1.msra.mxu0 0.0
        %1026 = vmatprep.subr.mxu0 0.0
        %1027 = vmatpush1.msra.mxu0 0.0
        %1028 = vmatprep.subr.mxu0 0.0
        %1029 = vmatpush1.msra.mxu0 0.0
        %1030 = vmatprep.subr.mxu0 0.0
        %1031 = vmatpush1.msra.mxu0 0.0
        %1032 = vmatprep.subr.mxu0 0.0
        %1033 = vmatpush1.msra.mxu0 0.0
        %1034 = vmatprep.subr.mxu0 0.0
        %1035 = vmatpush1.msra.mxu0 0.0
        %1036 = vmatprep.subr.mxu0 0.0
        %1037 = vmatpush1.msra.mxu0 0.0
        %1038 = vmatprep.subr.mxu0 0.0
        %1039 = vmatpush1.msra.mxu0 0.0
        %1040 = vmatprep.subr.mxu0 0.0
        %1041 = vmatpush1.msra.mxu0 0.0
        %1042 = vmatprep.subr.mxu0 0.0
        %1043 = vmatpush1.msra.mxu0 0.0
        %1044 = vmatprep.subr.mxu0 0.0
        %1045 = vmatpush1.msra.mxu0 0.0
        %1046 = vmatprep.mubr.f32.mxu0 0.0
        %1047 = vmatmul.mubr.f32.gmra.mrb[0].mxu0 %v913
        %v1048 = vpop.f32.mrb[0].mxu0
        %v1049 = vadd.f32 %v970, %v1048
        %v1050 = vpop.f32.mrb[0].mxu0
        %v1051 = vadd.f32 %v974, %v1050
        %1052 = vdwg.mxu0
        %1053 = vmatprep.subr.mxu0 0.0
        %1054 = vmatpush1.msra.mxu0 %v919
        %1055 = vmatprep.subr.mxu0 0.0
        %1056 = vmatpush1.msra.mxu0 %v922
        %1057 = vmatprep.subr.mxu0 0.0
        %1058 = vmatpush1.msra.mxu0 %v925
        %1059 = vmatprep.subr.mxu0 0.0
        %1060 = vmatpush1.msra.mxu0 %v928
        %1061 = vmatprep.subr.mxu0 0.0
        %1062 = vmatpush1.msra.mxu0 %v931
        %1063 = vmatprep.subr.mxu0 0.0
        %1064 = vmatpush1.msra.mxu0 %v934
        %1065 = vmatprep.subr.mxu0 0.0
        %1066 = vmatpush1.msra.mxu0 %v937
        %1067 = vmatprep.subr.mxu0 0.0
        %1068 = vmatpush1.msra.mxu0 %v940
        %1069 = vmatprep.subr.mxu0 0.0
        %1070 = vmatpush1.msra.mxu0 %v943
        %1071 = vmatprep.subr.mxu0 0.0
        %1072 = vmatpush1.msra.mxu0 %v946
        %1073 = vmatprep.subr.mxu0 0.0
        %1074 = vmatpush1.msra.mxu0 %v949
        %1075 = vmatprep.subr.mxu0 0.0
        %1076 = vmatpush1.msra.mxu0 %v952
        %1077 = vmatprep.subr.mxu0 0.0
        %1078 = vmatpush1.msra.mxu0 %v955
        %1079 = vmatprep.subr.mxu0 0.0
        %1080 = vmatpush1.msra.mxu0 %v958
        %1081 = vmatprep.subr.mxu0 0.0
        %1082 = vmatpush1.msra.mxu0 %v961
        %1083 = vmatprep.subr.mxu0 0.0
        %1084 = vmatpush1.msra.mxu0 %v964
        %1085 = vmatprep.subr.mxu0 0.0
        %1086 = vmatpush1.msra.mxu0 0.0
        %1087 = vmatprep.subr.mxu0 0.0
        %1088 = vmatpush1.msra.mxu0 0.0
        %1089 = vmatprep.subr.mxu0 0.0
        %1090 = vmatpush1.msra.mxu0 0.0
        %1091 = vmatprep.subr.mxu0 0.0
        %1092 = vmatpush1.msra.mxu0 0.0
        %1093 = vmatprep.subr.mxu0 0.0
        %1094 = vmatpush1.msra.mxu0 0.0
        %1095 = vmatprep.subr.mxu0 0.0
        %1096 = vmatpush1.msra.mxu0 0.0
        %1097 = vmatprep.subr.mxu0 0.0
        %1098 = vmatpush1.msra.mxu0 0.0
        %1099 = vmatprep.subr.mxu0 0.0
        %1100 = vmatpush1.msra.mxu0 0.0
        %1101 = vmatprep.subr.mxu0 0.0
        %1102 = vmatpush1.msra.mxu0 0.0
        %1103 = vmatprep.subr.mxu0 0.0
        %1104 = vmatpush1.msra.mxu0 0.0
        %1105 = vmatprep.subr.mxu0 0.0
        %1106 = vmatpush1.msra.mxu0 0.0
        %1107 = vmatprep.subr.mxu0 0.0
        %1108 = vmatpush1.msra.mxu0 0.0
        %1109 = vmatprep.subr.mxu0 0.0
        %1110 = vmatpush1.msra.mxu0 0.0
        %1111 = vmatprep.subr.mxu0 0.0
        %1112 = vmatpush1.msra.mxu0 0.0
        %1113 = vmatprep.subr.mxu0 0.0
        %1114 = vmatpush1.msra.mxu0 0.0
        %1115 = vmatprep.subr.mxu0 0.0
        %1116 = vmatpush1.msra.mxu0 0.0
        %1117 = vmatprep.mubr.f32.mxu0 0.0
        %1118 = vmatmul.mubr.f32.gmra.mrb[0].mxu0 %v913
        %v1119 = vpop.f32.mrb[0].mxu0
        %v1120 = vadd.f32 %v978, %v1119
        %v1121 = vpop.f32.mrb[0].mxu0
        %1122 = vdwg.mxu0
        %v1123 = vld [vmem:[#allocation12] sm:$0xff]
        %v1124 = vld [vmem:[#allocation12 + $0x8] sm:$0xff]
        %v1125 = vld [vmem:[#allocation12 + $0x18] sm:$0xff]
        %v1126 = vld [vmem:[#allocation12 + $0x20] sm:$0xff]
        %v1127 = vld [vmem:[#allocation12 + $0x30] sm:$0xff]
        %v1128 = vld [vmem:[#allocation12 + $0x38] sm:$0xff]
        %v1129 = vld [vmem:[#allocation12 + $0x48] sm:$0xff]
        %v1130 = vld [vmem:[#allocation12 + $0x50] sm:$0xff]
        %v1131 = vld [vmem:[#allocation12 + $0x60] sm:$0xff]
        %v1132 = vld [vmem:[#allocation12 + $0x68] sm:$0xff]
        %v1133 = vld [vmem:[#allocation12 + $0x78] sm:$0xff]
        %v1134 = vld [vmem:[#allocation12 + $0x80] sm:$0xff]
        %v1135 = vld [vmem:[#allocation12 + $0x90] sm:$0xff]
        %v1136 = vld [vmem:[#allocation12 + $0x98] sm:$0xff]
        %v1137 = vld [vmem:[#allocation12 + $0xa8] sm:$0xff]
        %v1138 = vld [vmem:[#allocation12 + $0xb0] sm:$0xff]
        %v1139 = vld [vmem:[#allocation12 + $0xc0] sm:$0xff]
        %v1140 = vld [vmem:[#allocation12 + $0xc8] sm:$0xff]
        %v1141 = vld [vmem:[#allocation12 + $0xd8] sm:$0xff]
        %v1142 = vld [vmem:[#allocation12 + $0xe0] sm:$0xff]
        %v1143 = vld [vmem:[#allocation12 + $0xf0] sm:$0xff]
        %v1144 = vld [vmem:[#allocation12 + $0xf8] sm:$0xff]
        %v1145 = vld [vmem:[#allocation12 + $0x108] sm:$0xff]
        %v1146 = vld [vmem:[#allocation12 + $0x110] sm:$0xff]
        %v1147 = vld [vmem:[#allocation12 + $0x120] sm:$0xff]
        %v1148 = vld [vmem:[#allocation12 + $0x128] sm:$0xff]
        %v1149 = vld [vmem:[#allocation12 + $0x138] sm:$0xff]
        %v1150 = vld [vmem:[#allocation12 + $0x140] sm:$0xff]
        %v1151 = vld [vmem:[#allocation12 + $0x150] sm:$0xff]
        %v1152 = vld [vmem:[#allocation12 + $0x158] sm:$0xff]
        %v1153 = vld [vmem:[#allocation12 + $0x168] sm:$0xff]
        %v1154 = vld [vmem:[#allocation12 + $0x170] sm:$0xff]
        %1155 = vmatprep.subr.mxu0 %v1124
        %1156 = vmatpush1.msra.mxu0 %v1123
        %1157 = vmatprep.subr.mxu0 %v1126
        %1158 = vmatpush1.msra.mxu0 %v1125
        %1159 = vmatprep.subr.mxu0 %v1128
        %1160 = vmatpush1.msra.mxu0 %v1127
        %1161 = vmatprep.subr.mxu0 %v1130
        %1162 = vmatpush1.msra.mxu0 %v1129
        %1163 = vmatprep.subr.mxu0 %v1132
        %1164 = vmatpush1.msra.mxu0 %v1131
        %1165 = vmatprep.subr.mxu0 %v1134
        %1166 = vmatpush1.msra.mxu0 %v1133
        %1167 = vmatprep.subr.mxu0 %v1136
        %1168 = vmatpush1.msra.mxu0 %v1135
        %1169 = vmatprep.subr.mxu0 %v1138
        %1170 = vmatpush1.msra.mxu0 %v1137
        %1171 = vmatprep.subr.mxu0 %v1140
        %1172 = vmatpush1.msra.mxu0 %v1139
        %1173 = vmatprep.subr.mxu0 %v1142
        %1174 = vmatpush1.msra.mxu0 %v1141
        %1175 = vmatprep.subr.mxu0 %v1144
        %1176 = vmatpush1.msra.mxu0 %v1143
        %1177 = vmatprep.subr.mxu0 %v1146
        %1178 = vmatpush1.msra.mxu0 %v1145
        %1179 = vmatprep.subr.mxu0 %v1148
        %1180 = vmatpush1.msra.mxu0 %v1147
        %1181 = vmatprep.subr.mxu0 %v1150
        %1182 = vmatpush1.msra.mxu0 %v1149
        %1183 = vmatprep.subr.mxu0 %v1152
        %1184 = vmatpush1.msra.mxu0 %v1151
        %1185 = vmatprep.subr.mxu0 %v1154
        %1186 = vmatpush1.msra.mxu0 %v1153
        %1187 = vmatprep.subr.mxu0 0.0
        %1188 = vmatpush1.msra.mxu0 0.0
        %1189 = vmatprep.subr.mxu0 0.0
        %1190 = vmatpush1.msra.mxu0 0.0
        %1191 = vmatprep.subr.mxu0 0.0
        %1192 = vmatpush1.msra.mxu0 0.0
        %1193 = vmatprep.subr.mxu0 0.0
        %1194 = vmatpush1.msra.mxu0 0.0
        %1195 = vmatprep.subr.mxu0 0.0
        %1196 = vmatpush1.msra.mxu0 0.0
        %1197 = vmatprep.subr.mxu0 0.0
        %1198 = vmatpush1.msra.mxu0 0.0
        %1199 = vmatprep.subr.mxu0 0.0
        %1200 = vmatpush1.msra.mxu0 0.0
        %1201 = vmatprep.subr.mxu0 0.0
        %1202 = vmatpush1.msra.mxu0 0.0
        %1203 = vmatprep.subr.mxu0 0.0
        %1204 = vmatpush1.msra.mxu0 0.0
        %1205 = vmatprep.subr.mxu0 0.0
        %1206 = vmatpush1.msra.mxu0 0.0
        %1207 = vmatprep.subr.mxu0 0.0
        %1208 = vmatpush1.msra.mxu0 0.0
        %1209 = vmatprep.subr.mxu0 0.0
        %1210 = vmatpush1.msra.mxu0 0.0
        %1211 = vmatprep.subr.mxu0 0.0
        %1212 = vmatpush1.msra.mxu0 0.0
        %1213 = vmatprep.subr.mxu0 0.0
        %1214 = vmatpush1.msra.mxu0 0.0
        %1215 = vmatprep.subr.mxu0 0.0
        %1216 = vmatpush1.msra.mxu0 0.0
        %1217 = vmatprep.subr.mxu0 0.0
        %1218 = vmatpush1.msra.mxu0 0.0
        %1219 = vmatprep.mubr.f32.mxu0 0.0
        %1220 = vmatmul.mubr.f32.gmra.mrb[0].mxu0 %v916
        %v1221 = vpop.f32.mrb[0].mxu0
        %v1222 = vadd.f32 0.0, %v1221
        %v1223 = vpop.f32.mrb[0].mxu0
        %v1224 = vadd.f32 0.0, %v1223
        %1225 = vdwg.mxu0
        %v1226 = vadd.f32 %v1049, %v1222
        %v1227 = vxor.u32 %v1226, 2147483648
        %v1228 = vmul.f32 %v1227, 1.442695
        %v1229 = vpow.pop %v1228
        %v1230 = vadd.f32 %v1229, 1.0
        %v1231 = vrcp.pop %v1230
        %v1232 = vmul.f32 1.0, %v1231
        %v1233 = vadd.f32 %v1051, %v1224
        %v1234 = vxor.u32 %v1233, 2147483648
        %v1235 = vmul.f32 %v1234, 1.442695
        %v1236 = vpow.pop %v1235
        %v1237 = vadd.f32 %v1236, 1.0
        %v1238 = vrcp.pop %v1237
        %v1239 = vmul.f32 1.0, %v1238
        %v1240 = vmul.f32 %v1239, %v916
        %v1241 = vld [vmem:[#allocation12 + $0x10] sm:$0xff]
        %v1242 = vld [vmem:[#allocation12 + $0x28] sm:$0xff]
        %v1243 = vld [vmem:[#allocation12 + $0x40] sm:$0xff]
        %v1244 = vld [vmem:[#allocation12 + $0x58] sm:$0xff]
        %v1245 = vld [vmem:[#allocation12 + $0x70] sm:$0xff]
        %v1246 = vld [vmem:[#allocation12 + $0x88] sm:$0xff]
        %v1247 = vld [vmem:[#allocation12 + $0xa0] sm:$0xff]
        %v1248 = vld [vmem:[#allocation12 + $0xb8] sm:$0xff]
        %v1249 = vld [vmem:[#allocation12 + $0xd0] sm:$0xff]
        %v1250 = vld [vmem:[#allocation12 + $0xe8] sm:$0xff]
        %v1251 = vld [vmem:[#allocation12 + $0x100] sm:$0xff]
        %v1252 = vld [vmem:[#allocation12 + $0x118] sm:$0xff]
        %v1253 = vld [vmem:[#allocation12 + $0x130] sm:$0xff]
        %v1254 = vld [vmem:[#allocation12 + $0x148] sm:$0xff]
        %v1255 = vld [vmem:[#allocation12 + $0x160] sm:$0xff]
        %v1256 = vld [vmem:[#allocation12 + $0x178] sm:$0xff]
        %1257 = vmatprep.subr.mxu0 0.0
        %1258 = vmatpush1.msra.mxu0 %v1241
        %1259 = vmatprep.subr.mxu0 0.0
        %1260 = vmatpush1.msra.mxu0 %v1242
        %1261 = vmatprep.subr.mxu0 0.0
        %1262 = vmatpush1.msra.mxu0 %v1243
        %1263 = vmatprep.subr.mxu0 0.0
        %1264 = vmatpush1.msra.mxu0 %v1244
        %1265 = vmatprep.subr.mxu0 0.0
        %1266 = vmatpush1.msra.mxu0 %v1245
        %1267 = vmatprep.subr.mxu0 0.0
        %1268 = vmatpush1.msra.mxu0 %v1246
        %1269 = vmatprep.subr.mxu0 0.0
        %1270 = vmatpush1.msra.mxu0 %v1247
        %1271 = vmatprep.subr.mxu0 0.0
        %1272 = vmatpush1.msra.mxu0 %v1248
        %1273 = vmatprep.subr.mxu0 0.0
        %1274 = vmatpush1.msra.mxu0 %v1249
        %1275 = vmatprep.subr.mxu0 0.0
        %1276 = vmatpush1.msra.mxu0 %v1250
        %1277 = vmatprep.subr.mxu0 0.0
        %1278 = vmatpush1.msra.mxu0 %v1251
        %1279 = vmatprep.subr.mxu0 0.0
        %1280 = vmatpush1.msra.mxu0 %v1252
        %1281 = vmatprep.subr.mxu0 0.0
        %1282 = vmatpush1.msra.mxu0 %v1253
        %1283 = vmatprep.subr.mxu0 0.0
        %1284 = vmatpush1.msra.mxu0 %v1254
        %1285 = vmatprep.subr.mxu0 0.0
        %1286 = vmatpush1.msra.mxu0 %v1255
        %1287 = vmatprep.subr.mxu0 0.0
        %1288 = vmatpush1.msra.mxu0 %v1256
        %1289 = vmatprep.subr.mxu0 0.0
        %1290 = vmatpush1.msra.mxu0 0.0
        %1291 = vmatprep.subr.mxu0 0.0
        %1292 = vmatpush1.msra.mxu0 0.0
        %1293 = vmatprep.subr.mxu0 0.0
        %1294 = vmatpush1.msra.mxu0 0.0
        %1295 = vmatprep.subr.mxu0 0.0
        %1296 = vmatpush1.msra.mxu0 0.0
        %1297 = vmatprep.subr.mxu0 0.0
        %1298 = vmatpush1.msra.mxu0 0.0
        %1299 = vmatprep.subr.mxu0 0.0
        %1300 = vmatpush1.msra.mxu0 0.0
        %1301 = vmatprep.subr.mxu0 0.0
        %1302 = vmatpush1.msra.mxu0 0.0
        %1303 = vmatprep.subr.mxu0 0.0
        %1304 = vmatpush1.msra.mxu0 0.0
        %1305 = vmatprep.subr.mxu0 0.0
        %1306 = vmatpush1.msra.mxu0 0.0
        %1307 = vmatprep.subr.mxu0 0.0
        %1308 = vmatpush1.msra.mxu0 0.0
        %1309 = vmatprep.subr.mxu0 0.0
        %1310 = vmatpush1.msra.mxu0 0.0
        %1311 = vmatprep.subr.mxu0 0.0
        %1312 = vmatpush1.msra.mxu0 0.0
        %1313 = vmatprep.subr.mxu0 0.0
        %1314 = vmatpush1.msra.mxu0 0.0
        %1315 = vmatprep.subr.mxu0 0.0
        %1316 = vmatpush1.msra.mxu0 0.0
        %1317 = vmatprep.subr.mxu0 0.0
        %1318 = vmatpush1.msra.mxu0 0.0
        %1319 = vmatprep.subr.mxu0 0.0
        %1320 = vmatpush1.msra.mxu0 0.0
        %1321 = vmatprep.mubr.f32.mxu0 0.0
        %1322 = vmatmul.mubr.f32.gmra.mrb[0].mxu0 %v1240
        %v1323 = vpop.f32.mrb[0].mxu0
        %v1324 = vadd.f32 0.0, %v1323
        %v1325 = vpop.f32.mrb[0].mxu0
        %1326 = vdwg.mxu0
        %v1327 = vadd.f32 %v1120, %v1324
        %v1328 = vtanh.pop %v1327
        %v1329 = vmul.f32 %v1232, %v916
        %v1330 = vsub.f32 1.0, %v1232
        %v1331 = vmul.f32 %v1330, %v1328
        %v1332 = vadd.f32 %v1329, %v1331
        %1333 = vst [vmem:[%s915] sm:$0xff] %v1332
        %v1334 = vld [vmem:[#allocation14] sm:$0xff]
        %v1335 = vld [vmem:[#allocation14 + $0x8] sm:$0xff]
        %v1336 = vld [vmem:[#allocation14 + $0x10] sm:$0xff]
        %v1337 = vld [vmem:[#allocation14 + $0x18] sm:$0xff]
        %v1338 = vld [vmem:[#allocation14 + $0x20] sm:$0xff]
        %v1339 = vld [vmem:[#allocation14 + $0x28] sm:$0xff]
        %v1340 = vld [vmem:[#allocation14 + $0x30] sm:$0xff]
        %v1341 = vld [vmem:[#allocation14 + $0x38] sm:$0xff]
        %v1342 = vld [vmem:[#allocation14 + $0x40] sm:$0xff]
        %v1343 = vld [vmem:[#allocation14 + $0x48] sm:$0xff]
        %v1344 = vld [vmem:[#allocation14 + $0x50] sm:$0xff]
        %v1345 = vld [vmem:[#allocation14 + $0x58] sm:$0xff]
        %v1346 = vld [vmem:[#allocation14 + $0x60] sm:$0xff]
        %v1347 = vld [vmem:[#allocation14 + $0x68] sm:$0xff]
        %v1348 = vld [vmem:[#allocation14 + $0x70] sm:$0xff]
        %v1349 = vld [vmem:[#allocation14 + $0x78] sm:$0xff]
        %v1350 = vld [vmem:[%s9] sm:$0x1]
        %v1352 = vlaneseq
        %v1353 = vshrl.u32 %v1352, 7
        %v1354 = vsub.s32 0, %v1353
        %v1355 = vrot.slane %v1350, %v1354
        %1357 = vmatprep.subr.mxu0 0.0
        %1358 = vmatpush1.msra.mxu0 %v1334
        %1359 = vmatprep.subr.mxu0 0.0
        %1360 = vmatpush1.msra.mxu0 %v1335
        %1361 = vmatprep.subr.mxu0 0.0
        %1362 = vmatpush1.msra.mxu0 %v1336
        %1363 = vmatprep.subr.mxu0 0.0
        %1364 = vmatpush1.msra.mxu0 %v1337
        %1365 = vmatprep.subr.mxu0 0.0
        %1366 = vmatpush1.msra.mxu0 %v1338
        %1367 = vmatprep.subr.mxu0 0.0
        %1368 = vmatpush1.msra.mxu0 %v1339
        %1369 = vmatprep.subr.mxu0 0.0
        %1370 = vmatpush1.msra.mxu0 %v1340
        %1371 = vmatprep.subr.mxu0 0.0
        %1372 = vmatpush1.msra.mxu0 %v1341
        %1373 = vmatprep.subr.mxu0 0.0
        %1374 = vmatpush1.msra.mxu0 %v1342
        %1375 = vmatprep.subr.mxu0 0.0
        %1376 = vmatpush1.msra.mxu0 %v1343
        %1377 = vmatprep.subr.mxu0 0.0
        %1378 = vmatpush1.msra.mxu0 %v1344
        %1379 = vmatprep.subr.mxu0 0.0
        %1380 = vmatpush1.msra.mxu0 %v1345
        %1381 = vmatprep.subr.mxu0 0.0
        %1382 = vmatpush1.msra.mxu0 %v1346
        %1383 = vmatprep.subr.mxu0 0.0
        %1384 = vmatpush1.msra.mxu0 %v1347
        %1385 = vmatprep.subr.mxu0 0.0
        %1386 = vmatpush1.msra.mxu0 %v1348
        %1387 = vmatprep.subr.mxu0 0.0
        %1388 = vmatpush1.msra.mxu0 %v1349
        %1389 = vmatprep.subr.mxu0 0.0
        %1390 = vmatpush1.msra.mxu0 0.0
        %1391 = vmatprep.subr.mxu0 0.0
        %1392 = vmatpush1.msra.mxu0 0.0
        %1393 = vmatprep.subr.mxu0 0.0
        %1394 = vmatpush1.msra.mxu0 0.0
        %1395 = vmatprep.subr.mxu0 0.0
        %1396 = vmatpush1.msra.mxu0 0.0
        %1397 = vmatprep.subr.mxu0 0.0
        %1398 = vmatpush1.msra.mxu0 0.0
        %1399 = vmatprep.subr.mxu0 0.0
        %1400 = vmatpush1.msra.mxu0 0.0
        %1401 = vmatprep.subr.mxu0 0.0
        %1402 = vmatpush1.msra.mxu0 0.0
        %1403 = vmatprep.subr.mxu0 0.0
        %1404 = vmatpush1.msra.mxu0 0.0
        %1405 = vmatprep.subr.mxu0 0.0
        %1406 = vmatpush1.msra.mxu0 0.0
        %1407 = vmatprep.subr.mxu0 0.0
        %1408 = vmatpush1.msra.mxu0 0.0
        %1409 = vmatprep.subr.mxu0 0.0
        %1410 = vmatpush1.msra.mxu0 0.0
        %1411 = vmatprep.subr.mxu0 0.0
        %1412 = vmatpush1.msra.mxu0 0.0
        %1413 = vmatprep.subr.mxu0 0.0
        %1414 = vmatpush1.msra.mxu0 0.0
        %1415 = vmatprep.subr.mxu0 0.0
        %1416 = vmatpush1.msra.mxu0 0.0
        %1417 = vmatprep.subr.mxu0 0.0
        %1418 = vmatpush1.msra.mxu0 0.0
        %1419 = vmatprep.subr.mxu0 0.0
        %1420 = vmatpush1.msra.mxu0 0.0
        %1421 = vmatprep.mubr.f32.mxu0 0.0
        %1422 = vmatmul.mubr.f32.gmra.mrb[0].mxu0 %v1332
        %v1423 = vpop.f32.mrb[0].mxu0
        %v1424 = vadd.f32 %v1355, %v1423
        %v1425 = vpop.f32.mrb[0].mxu0
        %1426 = vdwg.mxu0
        %1427 = vst [vmem:[%s485] sm:$0xff] %v1424
        %p1428 = scmp.eq.s32.totalorder %s33, 5
        // Predicated region
        $region93: #{tpu_custom_call.1} parent=59 // pred_check
          %p1429 = pneg %p1428
        $region94: #{tpu_custom_call.1} parent=59 // pred_check_branch
          %1431 = sbr.rel (%p1429) target = $region96
        $region95: #{tpu_custom_call.1} parent=59 // pred_region
          %v1432 = vld [vmem:[#allocation2] sm:$0xff]
          %v1433 = vld [vmem:[#allocation2 + $0x8] sm:$0xff]
          %1434 = vst [vmem:[#allocation16] sm:$0xff] %v1432
          %1435 = vst [vmem:[#allocation16 + $0x8] sm:$0xff] %v1433
        $region96: #{tpu_custom_call.1} parent=59 // pred_fallthru
          _
        %s1436 = sand.u32 %s256, 1
        %s1437 = scalar_lea.sflag [#allocation5], %s1436
        %s1438 = sand.u32 %s256, 1
        %s1439 = smul.addr %s1438, 8
        %s1440 = scalar_lea.vmem [#allocation15], %s1439
        // Predicated region
        $region97: #{tpu_custom_call.1} parent=59 // pred_check
          %p1441 = pneg %p266
        $region98: #{tpu_custom_call.1} parent=59 // pred_check_branch
          %1443 = sbr.rel (%p1441) target = $region100
        $region99: #{tpu_custom_call.1} parent=59 // pred_region
          %s1445 = ssub.s32 128, 128
          %1446 = vsyncadd %s1437, %s1445
          %s1447 = smul.addr %s33, 128
          %s1448 = scalar_lea.hbm %s10, %s1447
          %s1450 = sshll.u32 %s1440, 4
          %s1451 = int_to_ptr.vmem [resolvable:$true] %s1450
          %1453 = dma.vmem_to_hbm [thread:$0]  %s1451, 128, %s1448, %s1437
        $region100: #{tpu_custom_call.1} parent=59 // pred_fallthru
          _
        // Predicated region
        $region101: #{tpu_custom_call.1} parent=59 // pred_check
          %p1454 = pneg %p287
        $region102: #{tpu_custom_call.1} parent=59 // pred_check_branch
          %1456 = sbr.rel (%p1454) target = $region104
        $region103: #{tpu_custom_call.1} parent=59 // pred_region
          %s1458 = ssub.s32 256, 256
          %1459 = vsyncadd [#allocation17], %s1458
          %s1460 = sshll.u32 [#allocation16], 4
          %s1461 = int_to_ptr.vmem [resolvable:$true] %s1460
          %1466 = dma.vmem_to_hbm [thread:$0]  %s1461, 256, %s11, [#allocation17], 128, 128, 8
        $region104: #{tpu_custom_call.1} parent=59 // pred_fallthru
          _
        // Predicated region
        $region105: #{tpu_custom_call.1} parent=59 // pred_check
          %p1467 = pneg %p287
        $region106: #{tpu_custom_call.1} parent=59 // pred_check_branch
          %1469 = sbr.rel (%p1467) target = $region108
        $region107: #{tpu_custom_call.1} parent=59 // pred_region
          %1470 = dma.done [#allocation17], 256
        $region108: #{tpu_custom_call.1} parent=59 // pred_fallthru
          _
      $region60: #{tpu_custom_call.1} parent=5 // pred_fallthru
        _
      %p1471 = scmp.le.s32.totalorder 2, %s28
      // Predicated region
      $region109: #{tpu_custom_call.1} parent=5 // pred_check
        %p1472 = pneg %p1471
      $region110: #{tpu_custom_call.1} parent=5 // pred_check_branch
        %1474 = sbr.rel (%p1472) target = $region112
      $region111: #{tpu_custom_call.1} parent=5 // pred_region
        %s1475 = ssub.s32 %s28, 2
        // Predicated region
        $region113: #{tpu_custom_call.1} parent=111 // pred_check
          %p1476 = pneg %p272
        $region114: #{tpu_custom_call.1} parent=111 // pred_check_branch
          %1478 = sbr.rel (%p1476) target = $region116
        $region115: #{tpu_custom_call.1} parent=111 // pred_region
          %s1479 = sand.u32 %s257, 1
          %s1480 = scalar_lea.sflag [#allocation5], %s1479
          %s1481 = sand.u32 %s257, 1
          %s1482 = smul.addr %s1481, 8
          %s1483 = scalar_lea.vmem [#allocation15], %s1482
          %1484 = dma.done %s1480, 128
        $region116: #{tpu_custom_call.1} parent=111 // pred_fallthru
          _
      $region112: #{tpu_custom_call.1} parent=5 // pred_fallthru
        _
    $region6: #{tpu_custom_call.1} parent=1 // loop_footer
      %s32 = sadd.s32 1, %s28
    $region7: #{tpu_custom_call.1} parent=1 // loop_footer_branch
      %27 = sbr.rel target = $region3
    $region8: #{tpu_custom_call.1} parent=1 // loop_exit
      _
    %1485 = vsyncpa [#allocation4], 1
    %s1486 = scalar_lea.sflag [#allocation4], 1
    %1487 = vsyncpa %s1486, 1
    %1488 = vsyncpa [#allocation7], 1
    %s1489 = scalar_lea.sflag [#allocation7], 1
    %1490 = vsyncpa %s1489, 1
    %1491 = vsyncpa [#allocation10], 1
    %1492 = vsyncpa [#allocation13], 1
    %1493 = vsyncpa [#allocation5], 1
    %s1494 = scalar_lea.sflag [#allocation5], 1
    %1495 = vsyncpa %s1494, 1
    %1496 = vsyncpa [#allocation17], 1

</llo_original>
